<compile_context>
chip_gen: v6e
topology: v6e:2x2x1
jax: 0.10.0
libtpu: 0.0.40
codegen_flags: <defaults>
</compile_context>

<pallas_src>
import math
import functools

import jax
import jax.numpy as jnp
from jax import lax
from jax.experimental import pallas as pl
from jax.experimental.pallas import tpu as pltpu


def _make_kernel(nhead: int, d_model: int, matmul_dtype, approx_recip: bool,
                 eps: float = 1e-5):
    head_dim = d_model // nhead
    mm = matmul_dtype

    def kernel(q_ref, kv_ref, bias_ref, wq_ref, wkv_ref, wo_ref, w1_ref, w2_ref,
               vd_ref, bkv_ref, b1_ref, out_ref):
        Bblk, Lq, D = q_ref.shape
        Lk = kv_ref.shape[1]

        # packed (1, D) vectors: [bq(pre-scaled), bo, b2, g1, be1, g2, be2, pad]
        bq, bo, b2 = vd_ref[0:1, :], vd_ref[1:2, :], vd_ref[2:3, :]
        g1, be1 = vd_ref[3:4, :], vd_ref[4:5, :]
        g2, be2 = vd_ref[5:6, :], vd_ref[6:7, :]

        # flatten batch into the sublane/row axis (cheap leading-dim merge)
        q2 = q_ref[...].reshape(Bblk * Lq, D)            # f32
        kv2 = kv_ref[...].reshape(Bblk * Lk, D)          # already MXU dtype

        # ---- projections: MXU-dtype operands, f32 accumulation ----
        # wq/bq already carry the 1/sqrt(head_dim) score scale.
        qp = jnp.dot(q2.astype(mm), wq_ref[...],
                     preferred_element_type=jnp.float32) + bq              # (rows, D)
        kvp = jnp.dot(kv2, wkv_ref[...],
                      preferred_element_type=jnp.float32) + bkv_ref[...]   # (rows, 2D) = [K|V]

        # cast whole projected tiles to the MXU dtype ONCE; heads slice the bf16 tensors
        qp_m = qp.astype(mm).reshape(Bblk, Lq, D)
        kvp_m = kvp.astype(mm).reshape(Bblk, Lk, 2 * D)

        # precomputed additive bias (0 / -1e9), bf16 on the wire -> f32 once here
        bias = bias_ref[...].astype(jnp.float32)         # (Bblk, Lq, Lk)

        # ---- attention: batched over the batch block, per-head accumulation through Wo ----
        acc = jnp.zeros((Bblk * Lq, D), jnp.float32)
        for h in range(nhead):                           # static, small
            lo = h * head_dim
            hi = lo + head_dim
            qh = qp_m[:, :, lo:hi]                       # (Bblk, Lq, Dh)  bf16
            kh = kvp_m[:, :, lo:hi]                      # (Bblk, Lk, Dh)  bf16
            vh = kvp_m[:, :, D + lo:D + hi]              # (Bblk, Lk, Dh)  bf16
            # scores = qh @ kh^T, batch dim = Bblk, no explicit transpose
            s = lax.dot_general(qh, kh, (((2,), (2,)), ((0,), (0,))),
                                preferred_element_type=jnp.float32)        # (Bblk, Lq, Lk)
            s = s + bias
            m = jnp.max(s, axis=-1, keepdims=True)
            p = jnp.exp(s - m)
            denom = jnp.sum(p, axis=-1, keepdims=True)
            if approx_recip:
                p = p * pl.reciprocal(denom, approx=True)
            else:
                p = p / denom
            pv = lax.dot_general(p.astype(mm), vh, (((2,), (1,)), ((0,), (0,))),
                                 preferred_element_type=jnp.float32)       # (Bblk, Lq, Dh)
            pv2 = pv.reshape(Bblk * Lq, head_dim).astype(mm)
            acc = acc + jnp.dot(pv2, wo_ref[lo:hi, :],
                                preferred_element_type=jnp.float32)

        # dropout -> identity (inference); output-projection bias once + residual
        x = acc + bo + q2

        # ---- LayerNorm 1 (f32) ----
        mu = jnp.mean(x, axis=-1, keepdims=True)
        var = jnp.mean(jnp.square(x - mu), axis=-1, keepdims=True)
        x = (x - mu) * lax.rsqrt(var + eps) * g1 + be1

        # ---- FeedForward ----
        residual = x
        h1 = jnp.dot(x.astype(mm), w1_ref[...],
                     preferred_element_type=jnp.float32) + b1_ref[...]
        h1 = jnp.maximum(h1, 0.0)                        # ReLU
        h2 = jnp.dot(h1.astype(mm), w2_ref[...],
                     preferred_element_type=jnp.float32) + b2
        x = h2 + residual                                # dropout -> identity

        # ---- LayerNorm 2 (f32) ----
        mu = jnp.mean(x, axis=-1, keepdims=True)
        var = jnp.mean(jnp.square(x - mu), axis=-1, keepdims=True)
        x = (x - mu) * lax.rsqrt(var + eps) * g2 + be2

        out_ref[...] = x.reshape(Bblk, Lq, D).astype(out_ref.dtype)

    return kernel


def prepare_params(params, nhead, matmul_dtype=jnp.bfloat16):
    """One-time parameter preprocessing (hoisted out of the per-call jitted path)."""
    mm = matmul_dtype
    D = params["wq"].shape[0]
    scale = 1.0 / math.sqrt(D // nhead)
    return {
        # score scale folded into the Q projection (both weight and bias)
        "wq": (params["wq"] * scale).astype(mm),
        "wkv": jnp.concatenate([params["wk"], params["wv"]], axis=1).astype(mm),   # (D, 2D)
        "wo": params["wo"].astype(mm),
        "w1": params["w1"].astype(mm),
        "w2": params["w2"].astype(mm),
        "bkv": jnp.concatenate([params["bk"], params["bv"]], axis=1).astype(jnp.float32),
        "b1": params["b1"].astype(jnp.float32),
        # pack all (1, D) vectors into one (8, D) slab: bq*scale, bo, b2, g1, be1, g2, be2, pad
        "vecs_d": jnp.concatenate(
            [params["bq"] * scale, params["bo"], params["b2"],
             params["g1"], params["be1"], params["g2"], params["be2"],
             jnp.zeros((1, D), jnp.float32)], axis=0).astype(jnp.float32),
    }


def _default_batch_block(B: int) -> int:
    # v7x has 2 TensorCores per chip: give the "parallel" grid >= 2 steps so both run.
    # v5e/v6e have 1 TC: keep the whole batch in one grid step (no per-step overhead).
    try:
        kind = jax.devices()[0].device_kind.lower()
    except Exception:
        kind = ""
    if "v7" in kind and B >= 2 and B % 2 == 0:
        return B // 2
    return B


@functools.partial(jax.jit, static_argnames=("nhead", "matmul_dtype", "batch_block"))
def _encoder_layer_impl(q, kv, mask, prepped, *, nhead, matmul_dtype, batch_block):
    B, Lq, D = q.shape
    _, Lk, _ = kv.shape
    assert B % batch_block == 0, "batch must be divisible by batch_block"
    assert D % nhead == 0

    mm = matmul_dtype
    # kv is only ever an MXU operand -> cast at the boundary (halves its DMA for bf16)
    kv_in = kv.astype(mm)
    # additive attention bias precomputed once per call; bf16 on the wire
    bias = jnp.where(mask > 0, jnp.float32(0.0), jnp.float32(-1e9)).astype(jnp.bfloat16)

    kernel = _make_kernel(nhead, D, mm, approx_recip=(mm != jnp.float32))

    blk_q = pl.BlockSpec((batch_block, Lq, D), lambda g: (g, 0, 0))
    blk_kv = pl.BlockSpec((batch_block, Lk, D), lambda g: (g, 0, 0))
    blk_bias = pl.BlockSpec((batch_block, Lq, Lk), lambda g: (g, 0, 0))
    blk_out = pl.BlockSpec((batch_block, Lq, D), lambda g: (g, 0, 0))
    # weights: whole array resident in VMEM, no grid tiling / no double buffering
    vmem_const = pl.BlockSpec(memory_space=pltpu.MemorySpace.VMEM)

    return pl.pallas_call(
        kernel,
        out_shape=jax.ShapeDtypeStruct((B, Lq, D), jnp.float32),
        grid=(B // batch_block,),
        in_specs=[blk_q, blk_kv, blk_bias,
                  vmem_const,   # wq (pre-scaled)
                  vmem_const,   # wkv
                  vmem_const,   # wo
                  vmem_const,   # w1
                  vmem_const,   # w2
                  vmem_const,   # packed (8, D) vectors
                  vmem_const,   # bkv
                  vmem_const],  # b1
        out_specs=blk_out,
        compiler_params=pltpu.CompilerParams(
            dimension_semantics=("parallel",),
            vmem_limit_bytes=32 * 1024 * 1024),
    )(q, kv_in, bias, prepped["wq"], prepped["wkv"], prepped["wo"],
      prepped["w1"], prepped["w2"], prepped["vecs_d"], prepped["bkv"], prepped["b1"])


def encoder_layer(q, kv, mask, prepped, *, nhead,
                  matmul_dtype=jnp.bfloat16, batch_block=None):
    if batch_block is None:
        batch_block = _default_batch_block(q.shape[0])
    return _encoder_layer_impl(q, kv, mask, prepped, nhead=nhead,
                               matmul_dtype=matmul_dtype, batch_block=batch_block)


def reference_encoder_layer(q, kv, mask, params, nhead):
    """Pure-JAX f32 reference mirroring the PyTorch forward (eval mode)."""
    B, Lq, D = q.shape
    Lk = kv.shape[1]
    Dh = D // nhead
    scale = 1.0 / math.sqrt(Dh)

    def proj(x, w, b):
        return x @ w + b[0]

    qp = proj(q, params["wq"], params["bq"]).reshape(B, Lq, nhead, Dh).transpose(0, 2, 1, 3)
    kp = proj(kv, params["wk"], params["bk"]).reshape(B, Lk, nhead, Dh).transpose(0, 2, 1, 3)
    vp = proj(kv, params["wv"], params["bv"]).reshape(B, Lk, nhead, Dh).transpose(0, 2, 1, 3)
    scores = jnp.einsum("bhqd,bhkd->bhqk", qp, kp) * scale
    scores = jnp.where(mask[:, None, :, :] > 0, scores, -1e9)
    p = jax.nn.softmax(scores, axis=-1)
    attn = jnp.einsum("bhqk,bhkd->bhqd", p, vp).transpose(0, 2, 1, 3).reshape(B, Lq, D)
    attn = proj(attn, params["wo"], params["bo"])

    def ln(x, g, b):
        mu = jnp.mean(x, axis=-1, keepdims=True)
        var = jnp.mean((x - mu) ** 2, axis=-1, keepdims=True)
        return (x - mu) / jnp.sqrt(var + 1e-5) * g[0] + b[0]

    x = ln(attn + q, params["g1"], params["be1"])
    h = jnp.maximum(proj(x, params["w1"], params["b1"]), 0.0)
    h = proj(h, params["w2"], params["b2"])
    return ln(h + x, params["g2"], params["be2"])


if __name__ == "__main__":
    # small shapes implied by the module: seq=8, d_model=32, nhead=4, ffn_dim=64
    B, Lq, Lk, D, H, F = 2, 8, 8, 32, 4, 64

    key = jax.random.PRNGKey(0)
    keys = jax.random.split(key, 16)

    q = jax.random.normal(keys[0], (B, Lq, D), jnp.float32)
    kv = jax.random.normal(keys[1], (B, Lk, D), jnp.float32)
    # padding-style mask: mask out the last two kv positions of batch 1
    mask = jnp.ones((B, Lq, Lk), jnp.float32)
    mask = mask.at[1, :, -2:].set(0.0)

    def winit(k, shape, scale=0.05):
        return scale * jax.random.normal(k, shape, jnp.float32)

    params = {
        "wq": winit(keys[2], (D, D)), "bq": winit(keys[3], (1, D)),
        "wk": winit(keys[4], (D, D)), "bk": winit(keys[5], (1, D)),
        "wv": winit(keys[6], (D, D)), "bv": winit(keys[7], (1, D)),
        "wo": winit(keys[8], (D, D)), "bo": winit(keys[9], (1, D)),
        "g1": jnp.ones((1, D), jnp.float32), "be1": jnp.zeros((1, D), jnp.float32),
        "g2": jnp.ones((1, D), jnp.float32), "be2": jnp.zeros((1, D), jnp.float32),
        "w1": winit(keys[10], (D, F)), "b1": winit(keys[11], (1, F)),
        "w2": winit(keys[12], (F, D)), "b2": winit(keys[13], (1, D)),
    }

    ref = reference_encoder_layer(q, kv, mask, params, H)

    # default (bf16 MXU operands) path -- loose tolerance vs the f32 reference
    prepped_bf16 = prepare_params(params, H, matmul_dtype=jnp.bfloat16)
    out = encoder_layer(q, kv, mask, prepped_bf16, nhead=H)
    out = jax.block_until_ready(out)
    assert out.shape == (B, Lq, D)
    assert jnp.allclose(out, ref, atol=5e-2, rtol=5e-2), "bf16 kernel mismatch vs reference"

    # f32-matmul path (exact softmax divide) -- tight structural check
    prepped_f32 = prepare_params(params, H, matmul_dtype=jnp.float32)
    out_f32 = encoder_layer(q, kv, mask, prepped_f32, nhead=H, matmul_dtype=jnp.float32)
    out_f32 = jax.block_until_ready(out_f32)
    assert jnp.allclose(out_f32, ref, atol=1e-3, rtol=1e-3), "f32 kernel mismatch vs reference"

    print("KERNEL_OK")
</pallas_src>

<mosaic_0001>
module attributes {stable_mosaic.version = 11 : i64} {
  func.func @kernel(%arg0: i32, %arg1: memref<2x8x32xf32, #tpu.memory_space<vmem>>, %arg2: memref<2x8x32xbf16, #tpu.memory_space<vmem>>, %arg3: memref<2x8x8xbf16, #tpu.memory_space<vmem>>, %arg4: memref<32x32xbf16, #tpu.memory_space<vmem>>, %arg5: memref<32x64xbf16, #tpu.memory_space<vmem>>, %arg6: memref<32x32xbf16, #tpu.memory_space<vmem>>, %arg7: memref<32x64xbf16, #tpu.memory_space<vmem>>, %arg8: memref<64x32xbf16, #tpu.memory_space<vmem>>, %arg9: memref<8x32xf32, #tpu.memory_space<vmem>>, %arg10: memref<1x64xf32, #tpu.memory_space<vmem>>, %arg11: memref<1x64xf32, #tpu.memory_space<vmem>>, %arg12: memref<2x8x32xf32, #tpu.memory_space<vmem>>) attributes {dimension_semantics = [#tpu.dimension_semantics<parallel>], iteration_bounds = array<i64: 1>, scalar_prefetch = 0 : i64, scratch_operands = 0 : i64, tpu.core_type = #tpu.core_type<tc>, window_params = [{transform_indices = @transform_0, window_bounds = array<i64: 2, 8, 32>}, {transform_indices = @transform_1, window_bounds = array<i64: 2, 8, 32>}, {transform_indices = @transform_2, window_bounds = array<i64: 2, 8, 8>}, {pipeline_mode = #tpu.pipeline_mode<synchronous>, transform_indices = @transform_3, window_bounds = array<i64: 32, 32>}, {pipeline_mode = #tpu.pipeline_mode<synchronous>, transform_indices = @transform_4, window_bounds = array<i64: 32, 64>}, {pipeline_mode = #tpu.pipeline_mode<synchronous>, transform_indices = @transform_5, window_bounds = array<i64: 32, 32>}, {pipeline_mode = #tpu.pipeline_mode<synchronous>, transform_indices = @transform_6, window_bounds = array<i64: 32, 64>}, {pipeline_mode = #tpu.pipeline_mode<synchronous>, transform_indices = @transform_7, window_bounds = array<i64: 64, 32>}, {pipeline_mode = #tpu.pipeline_mode<synchronous>, transform_indices = @transform_8, window_bounds = array<i64: 8, 32>}, {pipeline_mode = #tpu.pipeline_mode<synchronous>, transform_indices = @transform_9, window_bounds = array<i64: 1, 64>}, {pipeline_mode = #tpu.pipeline_mode<synchronous>, transform_indices = @transform_10, window_bounds = array<i64: 1, 64>}, {transform_indices = @transform_11, window_bounds = array<i64: 2, 8, 32>}]} {
    %c0 = arith.constant 0 : index
    %c0_0 = arith.constant 0 : index
    %0 = vector.load %arg9[%c0, %c0_0] : memref<8x32xf32, #tpu.memory_space<vmem>>, vector<1x32xf32>
    %c1 = arith.constant 1 : index
    %c0_1 = arith.constant 0 : index
    %1 = vector.load %arg9[%c1, %c0_1] : memref<8x32xf32, #tpu.memory_space<vmem>>, vector<1x32xf32>
    %c2 = arith.constant 2 : index
    %c0_2 = arith.constant 0 : index
    %2 = vector.load %arg9[%c2, %c0_2] : memref<8x32xf32, #tpu.memory_space<vmem>>, vector<1x32xf32>
    %c3 = arith.constant 3 : index
    %c0_3 = arith.constant 0 : index
    %3 = vector.load %arg9[%c3, %c0_3] : memref<8x32xf32, #tpu.memory_space<vmem>>, vector<1x32xf32>
    %c4 = arith.constant 4 : index
    %c0_4 = arith.constant 0 : index
    %4 = vector.load %arg9[%c4, %c0_4] : memref<8x32xf32, #tpu.memory_space<vmem>>, vector<1x32xf32>
    %c5 = arith.constant 5 : index
    %c0_5 = arith.constant 0 : index
    %5 = vector.load %arg9[%c5, %c0_5] : memref<8x32xf32, #tpu.memory_space<vmem>>, vector<1x32xf32>
    %c6 = arith.constant 6 : index
    %c0_6 = arith.constant 0 : index
    %6 = vector.load %arg9[%c6, %c0_6] : memref<8x32xf32, #tpu.memory_space<vmem>>, vector<1x32xf32>
    %c0_7 = arith.constant 0 : index
    %c0_8 = arith.constant 0 : index
    %c0_9 = arith.constant 0 : index
    %7 = vector.load %arg1[%c0_7, %c0_8, %c0_9] : memref<2x8x32xf32, #tpu.memory_space<vmem>>, vector<2x8x32xf32>
    %8 = vector.shape_cast %7 : vector<2x8x32xf32> to vector<16x32xf32>
    %c0_10 = arith.constant 0 : index
    %c0_11 = arith.constant 0 : index
    %c0_12 = arith.constant 0 : index
    %9 = vector.load %arg2[%c0_10, %c0_11, %c0_12] : memref<2x8x32xbf16, #tpu.memory_space<vmem>>, vector<2x8x32xbf16>
    %10 = vector.shape_cast %9 : vector<2x8x32xbf16> to vector<16x32xbf16>
    %11 = arith.truncf %8 : vector<16x32xf32> to vector<16x32xbf16>
    %c0_13 = arith.constant 0 : index
    %c0_14 = arith.constant 0 : index
    %12 = vector.load %arg4[%c0_13, %c0_14] : memref<32x32xbf16, #tpu.memory_space<vmem>>, vector<32x32xbf16>
    %cst = arith.constant dense<0.000000e+00> : vector<16x32xf32>
    %13 = tpu.matmul %11, %12, %cst {dimension_numbers = #tpu.dot_dimension_numbers<[1], [0], [0], [1], [0, 0, 1, 1], [], []>} : vector<16x32xbf16>, vector<32x32xbf16>, vector<16x32xf32> -> vector<16x32xf32>
    %14 = vector.broadcast %0 : vector<1x32xf32> to vector<16x32xf32>
    %15 = arith.addf %13, %14 : vector<16x32xf32>
    %c0_15 = arith.constant 0 : index
    %c0_16 = arith.constant 0 : index
    %16 = vector.load %arg5[%c0_15, %c0_16] : memref<32x64xbf16, #tpu.memory_space<vmem>>, vector<32x64xbf16>
    %cst_17 = arith.constant dense<0.000000e+00> : vector<16x64xf32>
    %17 = tpu.matmul %10, %16, %cst_17 {dimension_numbers = #tpu.dot_dimension_numbers<[1], [0], [0], [1], [0, 0, 1, 1], [], []>} : vector<16x32xbf16>, vector<32x64xbf16>, vector<16x64xf32> -> vector<16x64xf32>
    %c0_18 = arith.constant 0 : index
    %c0_19 = arith.constant 0 : index
    %18 = vector.load %arg10[%c0_18, %c0_19] : memref<1x64xf32, #tpu.memory_space<vmem>>, vector<1x64xf32>
    %19 = vector.broadcast %18 : vector<1x64xf32> to vector<16x64xf32>
    %20 = arith.addf %17, %19 : vector<16x64xf32>
    %21 = arith.truncf %15 : vector<16x32xf32> to vector<16x32xbf16>
    %22 = vector.shape_cast %21 : vector<16x32xbf16> to vector<2x8x32xbf16>
    %23 = arith.truncf %20 : vector<16x64xf32> to vector<16x64xbf16>
    %24 = vector.shape_cast %23 : vector<16x64xbf16> to vector<2x8x64xbf16>
    %c0_20 = arith.constant 0 : index
    %c0_21 = arith.constant 0 : index
    %c0_22 = arith.constant 0 : index
    %25 = vector.load %arg3[%c0_20, %c0_21, %c0_22] : memref<2x8x8xbf16, #tpu.memory_space<vmem>>, vector<2x8x8xbf16>
    %26 = arith.extf %25 : vector<2x8x8xbf16> to vector<2x8x8xf32>
    %cst_23 = arith.constant 0.000000e+00 : f32
    %27 = vector.broadcast %cst_23 : f32 to vector<16x32xf32>
    %28 = vector.extract_strided_slice %22 {offsets = [0, 0, 0], sizes = [2, 8, 8], strides = [1, 1, 1]} : vector<2x8x32xbf16> to vector<2x8x8xbf16>
    %29 = vector.extract_strided_slice %24 {offsets = [0, 0, 0], sizes = [2, 8, 8], strides = [1, 1, 1]} : vector<2x8x64xbf16> to vector<2x8x8xbf16>
    %30 = vector.extract_strided_slice %24 {offsets = [0, 0, 32], sizes = [2, 8, 8], strides = [1, 1, 1]} : vector<2x8x64xbf16> to vector<2x8x8xbf16>
    %cst_24 = arith.constant dense<0.000000e+00> : vector<2x8x8xf32>
    %31 = tpu.matmul %28, %29, %cst_24 {dimension_numbers = #tpu.dot_dimension_numbers<[2], [2], [1], [1], [0, 0, 0, 1, 1, 1], [0], [0]>} : vector<2x8x8xbf16>, vector<2x8x8xbf16>, vector<2x8x8xf32> -> vector<2x8x8xf32>
    %32 = arith.addf %31, %26 : vector<2x8x8xf32>
    %cst_25 = arith.constant dense<0xFF800000> : vector<2x8xf32>
    %33 = vector.multi_reduction <maximumf>, %32, %cst_25 [2] : vector<2x8x8xf32> to vector<2x8xf32>
    %34 = vector.shape_cast %33 : vector<2x8xf32> to vector<2x8x1xf32>
    %35 = vector.broadcast %34 : vector<2x8x1xf32> to vector<2x8x8xf32>
    %36 = arith.subf %32, %35 : vector<2x8x8xf32>
    %37 = math.exp %36 : vector<2x8x8xf32>
    %cst_26 = arith.constant dense<0.000000e+00> : vector<2x8xf32>
    %38 = vector.multi_reduction <add>, %37, %cst_26 [2] : vector<2x8x8xf32> to vector<2x8xf32>
    %39 = vector.shape_cast %38 : vector<2x8xf32> to vector<2x8x1xf32>
    %40 = tpu.reciprocal %39 {approx = true} : vector<2x8x1xf32> -> vector<2x8x1xf32>
    %41 = vector.broadcast %40 : vector<2x8x1xf32> to vector<2x8x8xf32>
    %42 = arith.mulf %37, %41 : vector<2x8x8xf32>
    %43 = arith.truncf %42 : vector<2x8x8xf32> to vector<2x8x8xbf16>
    %cst_27 = arith.constant dense<0.000000e+00> : vector<2x8x8xf32>
    %44 = tpu.matmul %43, %30, %cst_27 {dimension_numbers = #tpu.dot_dimension_numbers<[2], [1], [1], [2], [0, 0, 0, 1, 1, 2], [0], [0]>} : vector<2x8x8xbf16>, vector<2x8x8xbf16>, vector<2x8x8xf32> -> vector<2x8x8xf32>
    %45 = vector.shape_cast %44 : vector<2x8x8xf32> to vector<16x8xf32>
    %46 = arith.truncf %45 : vector<16x8xf32> to vector<16x8xbf16>
    %c0_28 = arith.constant 0 : index
    %c0_29 = arith.constant 0 : index
    %47 = vector.load %arg6[%c0_28, %c0_29] : memref<32x32xbf16, #tpu.memory_space<vmem>>, vector<8x32xbf16>
    %cst_30 = arith.constant dense<0.000000e+00> : vector<16x32xf32>
    %48 = tpu.matmul %46, %47, %cst_30 {dimension_numbers = #tpu.dot_dimension_numbers<[1], [0], [0], [1], [0, 0, 1, 1], [], []>} : vector<16x8xbf16>, vector<8x32xbf16>, vector<16x32xf32> -> vector<16x32xf32>
    %49 = arith.addf %27, %48 : vector<16x32xf32>
    %50 = vector.extract_strided_slice %22 {offsets = [0, 0, 8], sizes = [2, 8, 8], strides = [1, 1, 1]} : vector<2x8x32xbf16> to vector<2x8x8xbf16>
    %51 = vector.extract_strided_slice %24 {offsets = [0, 0, 8], sizes = [2, 8, 8], strides = [1, 1, 1]} : vector<2x8x64xbf16> to vector<2x8x8xbf16>
    %52 = vector.extract_strided_slice %24 {offsets = [0, 0, 40], sizes = [2, 8, 8], strides = [1, 1, 1]} : vector<2x8x64xbf16> to vector<2x8x8xbf16>
    %cst_31 = arith.constant dense<0.000000e+00> : vector<2x8x8xf32>
    %53 = tpu.matmul %50, %51, %cst_31 {dimension_numbers = #tpu.dot_dimension_numbers<[2], [2], [1], [1], [0, 0, 0, 1, 1, 1], [0], [0]>} : vector<2x8x8xbf16>, vector<2x8x8xbf16>, vector<2x8x8xf32> -> vector<2x8x8xf32>
    %54 = arith.addf %53, %26 : vector<2x8x8xf32>
    %cst_32 = arith.constant dense<0xFF800000> : vector<2x8xf32>
    %55 = vector.multi_reduction <maximumf>, %54, %cst_32 [2] : vector<2x8x8xf32> to vector<2x8xf32>
    %56 = vector.shape_cast %55 : vector<2x8xf32> to vector<2x8x1xf32>
    %57 = vector.broadcast %56 : vector<2x8x1xf32> to vector<2x8x8xf32>
    %58 = arith.subf %54, %57 : vector<2x8x8xf32>
    %59 = math.exp %58 : vector<2x8x8xf32>
    %cst_33 = arith.constant dense<0.000000e+00> : vector<2x8xf32>
    %60 = vector.multi_reduction <add>, %59, %cst_33 [2] : vector<2x8x8xf32> to vector<2x8xf32>
    %61 = vector.shape_cast %60 : vector<2x8xf32> to vector<2x8x1xf32>
    %62 = tpu.reciprocal %61 {approx = true} : vector<2x8x1xf32> -> vector<2x8x1xf32>
    %63 = vector.broadcast %62 : vector<2x8x1xf32> to vector<2x8x8xf32>
    %64 = arith.mulf %59, %63 : vector<2x8x8xf32>
    %65 = arith.truncf %64 : vector<2x8x8xf32> to vector<2x8x8xbf16>
    %cst_34 = arith.constant dense<0.000000e+00> : vector<2x8x8xf32>
    %66 = tpu.matmul %65, %52, %cst_34 {dimension_numbers = #tpu.dot_dimension_numbers<[2], [1], [1], [2], [0, 0, 0, 1, 1, 2], [0], [0]>} : vector<2x8x8xbf16>, vector<2x8x8xbf16>, vector<2x8x8xf32> -> vector<2x8x8xf32>
    %67 = vector.shape_cast %66 : vector<2x8x8xf32> to vector<16x8xf32>
    %68 = arith.truncf %67 : vector<16x8xf32> to vector<16x8xbf16>
    %c8 = arith.constant 8 : index
    %c0_35 = arith.constant 0 : index
    %69 = vector.load %arg6[%c8, %c0_35] : memref<32x32xbf16, #tpu.memory_space<vmem>>, vector<8x32xbf16>
    %cst_36 = arith.constant dense<0.000000e+00> : vector<16x32xf32>
    %70 = tpu.matmul %68, %69, %cst_36 {dimension_numbers = #tpu.dot_dimension_numbers<[1], [0], [0], [1], [0, 0, 1, 1], [], []>} : vector<16x8xbf16>, vector<8x32xbf16>, vector<16x32xf32> -> vector<16x32xf32>
    %71 = arith.addf %49, %70 : vector<16x32xf32>
    %72 = vector.extract_strided_slice %22 {offsets = [0, 0, 16], sizes = [2, 8, 8], strides = [1, 1, 1]} : vector<2x8x32xbf16> to vector<2x8x8xbf16>
    %73 = vector.extract_strided_slice %24 {offsets = [0, 0, 16], sizes = [2, 8, 8], strides = [1, 1, 1]} : vector<2x8x64xbf16> to vector<2x8x8xbf16>
    %74 = vector.extract_strided_slice %24 {offsets = [0, 0, 48], sizes = [2, 8, 8], strides = [1, 1, 1]} : vector<2x8x64xbf16> to vector<2x8x8xbf16>
    %cst_37 = arith.constant dense<0.000000e+00> : vector<2x8x8xf32>
    %75 = tpu.matmul %72, %73, %cst_37 {dimension_numbers = #tpu.dot_dimension_numbers<[2], [2], [1], [1], [0, 0, 0, 1, 1, 1], [0], [0]>} : vector<2x8x8xbf16>, vector<2x8x8xbf16>, vector<2x8x8xf32> -> vector<2x8x8xf32>
    %76 = arith.addf %75, %26 : vector<2x8x8xf32>
    %cst_38 = arith.constant dense<0xFF800000> : vector<2x8xf32>
    %77 = vector.multi_reduction <maximumf>, %76, %cst_38 [2] : vector<2x8x8xf32> to vector<2x8xf32>
    %78 = vector.shape_cast %77 : vector<2x8xf32> to vector<2x8x1xf32>
    %79 = vector.broadcast %78 : vector<2x8x1xf32> to vector<2x8x8xf32>
    %80 = arith.subf %76, %79 : vector<2x8x8xf32>
    %81 = math.exp %80 : vector<2x8x8xf32>
    %cst_39 = arith.constant dense<0.000000e+00> : vector<2x8xf32>
    %82 = vector.multi_reduction <add>, %81, %cst_39 [2] : vector<2x8x8xf32> to vector<2x8xf32>
    %83 = vector.shape_cast %82 : vector<2x8xf32> to vector<2x8x1xf32>
    %84 = tpu.reciprocal %83 {approx = true} : vector<2x8x1xf32> -> vector<2x8x1xf32>
    %85 = vector.broadcast %84 : vector<2x8x1xf32> to vector<2x8x8xf32>
    %86 = arith.mulf %81, %85 : vector<2x8x8xf32>
    %87 = arith.truncf %86 : vector<2x8x8xf32> to vector<2x8x8xbf16>
    %cst_40 = arith.constant dense<0.000000e+00> : vector<2x8x8xf32>
    %88 = tpu.matmul %87, %74, %cst_40 {dimension_numbers = #tpu.dot_dimension_numbers<[2], [1], [1], [2], [0, 0, 0, 1, 1, 2], [0], [0]>} : vector<2x8x8xbf16>, vector<2x8x8xbf16>, vector<2x8x8xf32> -> vector<2x8x8xf32>
    %89 = vector.shape_cast %88 : vector<2x8x8xf32> to vector<16x8xf32>
    %90 = arith.truncf %89 : vector<16x8xf32> to vector<16x8xbf16>
    %c16 = arith.constant 16 : index
    %c0_41 = arith.constant 0 : index
    %91 = vector.load %arg6[%c16, %c0_41] : memref<32x32xbf16, #tpu.memory_space<vmem>>, vector<8x32xbf16>
    %cst_42 = arith.constant dense<0.000000e+00> : vector<16x32xf32>
    %92 = tpu.matmul %90, %91, %cst_42 {dimension_numbers = #tpu.dot_dimension_numbers<[1], [0], [0], [1], [0, 0, 1, 1], [], []>} : vector<16x8xbf16>, vector<8x32xbf16>, vector<16x32xf32> -> vector<16x32xf32>
    %93 = arith.addf %71, %92 : vector<16x32xf32>
    %94 = vector.extract_strided_slice %22 {offsets = [0, 0, 24], sizes = [2, 8, 8], strides = [1, 1, 1]} : vector<2x8x32xbf16> to vector<2x8x8xbf16>
    %95 = vector.extract_strided_slice %24 {offsets = [0, 0, 24], sizes = [2, 8, 8], strides = [1, 1, 1]} : vector<2x8x64xbf16> to vector<2x8x8xbf16>
    %96 = vector.extract_strided_slice %24 {offsets = [0, 0, 56], sizes = [2, 8, 8], strides = [1, 1, 1]} : vector<2x8x64xbf16> to vector<2x8x8xbf16>
    %cst_43 = arith.constant dense<0.000000e+00> : vector<2x8x8xf32>
    %97 = tpu.matmul %94, %95, %cst_43 {dimension_numbers = #tpu.dot_dimension_numbers<[2], [2], [1], [1], [0, 0, 0, 1, 1, 1], [0], [0]>} : vector<2x8x8xbf16>, vector<2x8x8xbf16>, vector<2x8x8xf32> -> vector<2x8x8xf32>
    %98 = arith.addf %97, %26 : vector<2x8x8xf32>
    %cst_44 = arith.constant dense<0xFF800000> : vector<2x8xf32>
    %99 = vector.multi_reduction <maximumf>, %98, %cst_44 [2] : vector<2x8x8xf32> to vector<2x8xf32>
    %100 = vector.shape_cast %99 : vector<2x8xf32> to vector<2x8x1xf32>
    %101 = vector.broadcast %100 : vector<2x8x1xf32> to vector<2x8x8xf32>
    %102 = arith.subf %98, %101 : vector<2x8x8xf32>
    %103 = math.exp %102 : vector<2x8x8xf32>
    %cst_45 = arith.constant dense<0.000000e+00> : vector<2x8xf32>
    %104 = vector.multi_reduction <add>, %103, %cst_45 [2] : vector<2x8x8xf32> to vector<2x8xf32>
    %105 = vector.shape_cast %104 : vector<2x8xf32> to vector<2x8x1xf32>
    %106 = tpu.reciprocal %105 {approx = true} : vector<2x8x1xf32> -> vector<2x8x1xf32>
    %107 = vector.broadcast %106 : vector<2x8x1xf32> to vector<2x8x8xf32>
    %108 = arith.mulf %103, %107 : vector<2x8x8xf32>
    %109 = arith.truncf %108 : vector<2x8x8xf32> to vector<2x8x8xbf16>
    %cst_46 = arith.constant dense<0.000000e+00> : vector<2x8x8xf32>
    %110 = tpu.matmul %109, %96, %cst_46 {dimension_numbers = #tpu.dot_dimension_numbers<[2], [1], [1], [2], [0, 0, 0, 1, 1, 2], [0], [0]>} : vector<2x8x8xbf16>, vector<2x8x8xbf16>, vector<2x8x8xf32> -> vector<2x8x8xf32>
    %111 = vector.shape_cast %110 : vector<2x8x8xf32> to vector<16x8xf32>
    %112 = arith.truncf %111 : vector<16x8xf32> to vector<16x8xbf16>
    %c24 = arith.constant 24 : index
    %c0_47 = arith.constant 0 : index
    %113 = vector.load %arg6[%c24, %c0_47] : memref<32x32xbf16, #tpu.memory_space<vmem>>, vector<8x32xbf16>
    %cst_48 = arith.constant dense<0.000000e+00> : vector<16x32xf32>
    %114 = tpu.matmul %112, %113, %cst_48 {dimension_numbers = #tpu.dot_dimension_numbers<[1], [0], [0], [1], [0, 0, 1, 1], [], []>} : vector<16x8xbf16>, vector<8x32xbf16>, vector<16x32xf32> -> vector<16x32xf32>
    %115 = arith.addf %93, %114 : vector<16x32xf32>
    %116 = vector.broadcast %1 : vector<1x32xf32> to vector<16x32xf32>
    %117 = arith.addf %115, %116 : vector<16x32xf32>
    %118 = arith.addf %117, %8 : vector<16x32xf32>
    %cst_49 = arith.constant dense<0.000000e+00> : vector<16xf32>
    %119 = vector.multi_reduction <add>, %118, %cst_49 [1] : vector<16x32xf32> to vector<16xf32>
    %120 = vector.shape_cast %119 : vector<16xf32> to vector<16x1xf32>
    %cst_50 = arith.constant 3.200000e+01 : f32
    %121 = vector.broadcast %cst_50 : f32 to vector<16x1xf32>
    %122 = arith.divf %120, %121 : vector<16x1xf32>
    %123 = vector.broadcast %122 : vector<16x1xf32> to vector<16x32xf32>
    %124 = arith.subf %118, %123 : vector<16x32xf32>
    %125 = arith.mulf %124, %124 : vector<16x32xf32>
    %cst_51 = arith.constant dense<0.000000e+00> : vector<16xf32>
    %126 = vector.multi_reduction <add>, %125, %cst_51 [1] : vector<16x32xf32> to vector<16xf32>
    %127 = vector.shape_cast %126 : vector<16xf32> to vector<16x1xf32>
    %cst_52 = arith.constant 3.200000e+01 : f32
    %128 = vector.broadcast %cst_52 : f32 to vector<16x1xf32>
    %129 = arith.divf %127, %128 : vector<16x1xf32>
    %130 = vector.broadcast %122 : vector<16x1xf32> to vector<16x32xf32>
    %131 = arith.subf %118, %130 : vector<16x32xf32>
    %cst_53 = arith.constant 9.99999974E-6 : f32
    %132 = vector.broadcast %cst_53 : f32 to vector<16x1xf32>
    %133 = arith.addf %129, %132 : vector<16x1xf32>
    %134 = math.rsqrt %133 : vector<16x1xf32>
    %135 = vector.broadcast %134 : vector<16x1xf32> to vector<16x32xf32>
    %136 = arith.mulf %131, %135 : vector<16x32xf32>
    %137 = vector.broadcast %3 : vector<1x32xf32> to vector<16x32xf32>
    %138 = arith.mulf %136, %137 : vector<16x32xf32>
    %139 = vector.broadcast %4 : vector<1x32xf32> to vector<16x32xf32>
    %140 = arith.addf %138, %139 : vector<16x32xf32>
    %141 = arith.truncf %140 : vector<16x32xf32> to vector<16x32xbf16>
    %c0_54 = arith.constant 0 : index
    %c0_55 = arith.constant 0 : index
    %142 = vector.load %arg7[%c0_54, %c0_55] : memref<32x64xbf16, #tpu.memory_space<vmem>>, vector<32x64xbf16>
    %cst_56 = arith.constant dense<0.000000e+00> : vector<16x64xf32>
    %143 = tpu.matmul %141, %142, %cst_56 {dimension_numbers = #tpu.dot_dimension_numbers<[1], [0], [0], [1], [0, 0, 1, 1], [], []>} : vector<16x32xbf16>, vector<32x64xbf16>, vector<16x64xf32> -> vector<16x64xf32>
    %c0_57 = arith.constant 0 : index
    %c0_58 = arith.constant 0 : index
    %144 = vector.load %arg11[%c0_57, %c0_58] : memref<1x64xf32, #tpu.memory_space<vmem>>, vector<1x64xf32>
    %145 = vector.broadcast %144 : vector<1x64xf32> to vector<16x64xf32>
    %146 = arith.addf %143, %145 : vector<16x64xf32>
    %cst_59 = arith.constant 0.000000e+00 : f32
    %147 = vector.broadcast %cst_59 : f32 to vector<16x64xf32>
    %148 = arith.maximumf %146, %147 : vector<16x64xf32>
    %149 = arith.truncf %148 : vector<16x64xf32> to vector<16x64xbf16>
    %c0_60 = arith.constant 0 : index
    %c0_61 = arith.constant 0 : index
    %150 = vector.load %arg8[%c0_60, %c0_61] : memref<64x32xbf16, #tpu.memory_space<vmem>>, vector<64x32xbf16>
    %cst_62 = arith.constant dense<0.000000e+00> : vector<16x32xf32>
    %151 = tpu.matmul %149, %150, %cst_62 {dimension_numbers = #tpu.dot_dimension_numbers<[1], [0], [0], [1], [0, 0, 1, 1], [], []>} : vector<16x64xbf16>, vector<64x32xbf16>, vector<16x32xf32> -> vector<16x32xf32>
    %152 = vector.broadcast %2 : vector<1x32xf32> to vector<16x32xf32>
    %153 = arith.addf %151, %152 : vector<16x32xf32>
    %154 = arith.addf %153, %140 : vector<16x32xf32>
    %cst_63 = arith.constant dense<0.000000e+00> : vector<16xf32>
    %155 = vector.multi_reduction <add>, %154, %cst_63 [1] : vector<16x32xf32> to vector<16xf32>
    %156 = vector.shape_cast %155 : vector<16xf32> to vector<16x1xf32>
    %cst_64 = arith.constant 3.200000e+01 : f32
    %157 = vector.broadcast %cst_64 : f32 to vector<16x1xf32>
    %158 = arith.divf %156, %157 : vector<16x1xf32>
    %159 = vector.broadcast %158 : vector<16x1xf32> to vector<16x32xf32>
    %160 = arith.subf %154, %159 : vector<16x32xf32>
    %161 = arith.mulf %160, %160 : vector<16x32xf32>
    %cst_65 = arith.constant dense<0.000000e+00> : vector<16xf32>
    %162 = vector.multi_reduction <add>, %161, %cst_65 [1] : vector<16x32xf32> to vector<16xf32>
    %163 = vector.shape_cast %162 : vector<16xf32> to vector<16x1xf32>
    %cst_66 = arith.constant 3.200000e+01 : f32
    %164 = vector.broadcast %cst_66 : f32 to vector<16x1xf32>
    %165 = arith.divf %163, %164 : vector<16x1xf32>
    %166 = vector.broadcast %158 : vector<16x1xf32> to vector<16x32xf32>
    %167 = arith.subf %154, %166 : vector<16x32xf32>
    %cst_67 = arith.constant 9.99999974E-6 : f32
    %168 = vector.broadcast %cst_67 : f32 to vector<16x1xf32>
    %169 = arith.addf %165, %168 : vector<16x1xf32>
    %170 = math.rsqrt %169 : vector<16x1xf32>
    %171 = vector.broadcast %170 : vector<16x1xf32> to vector<16x32xf32>
    %172 = arith.mulf %167, %171 : vector<16x32xf32>
    %173 = vector.broadcast %5 : vector<1x32xf32> to vector<16x32xf32>
    %174 = arith.mulf %172, %173 : vector<16x32xf32>
    %175 = vector.broadcast %6 : vector<1x32xf32> to vector<16x32xf32>
    %176 = arith.addf %174, %175 : vector<16x32xf32>
    %177 = vector.shape_cast %176 : vector<16x32xf32> to vector<2x8x32xf32>
    %c0_68 = arith.constant 0 : index
    %c0_69 = arith.constant 0 : index
    %c0_70 = arith.constant 0 : index
    %178 = vector.load %arg12[%c0_68, %c0_69, %c0_70] : memref<2x8x32xf32, #tpu.memory_space<vmem>>, vector<2x8x32xf32>
    tpu.vector_store %arg12[%c0_68, %c0_69, %c0_70], %177 {strides = array<i32>} : memref<2x8x32xf32, #tpu.memory_space<vmem>>, vector<2x8x32xf32>,
    return
  }
  func.func @transform_0(%arg0: i32) -> (i32, i32, i32) {
    %c0_i32 = arith.constant 0 : i32
    %c0_i32_0 = arith.constant 0 : i32
    %c0_i32_1 = arith.constant 0 : i32
    return %arg0, %c0_i32, %c0_i32_0 : i32, i32, i32
  }
  func.func @transform_1(%arg0: i32) -> (i32, i32, i32) {
    %c0_i32 = arith.constant 0 : i32
    %c0_i32_0 = arith.constant 0 : i32
    %c0_i32_1 = arith.constant 0 : i32
    return %arg0, %c0_i32, %c0_i32_0 : i32, i32, i32
  }
  func.func @transform_2(%arg0: i32) -> (i32, i32, i32) {
    %c0_i32 = arith.constant 0 : i32
    %c0_i32_0 = arith.constant 0 : i32
    %c0_i32_1 = arith.constant 0 : i32
    return %arg0, %c0_i32, %c0_i32_0 : i32, i32, i32
  }
  func.func @transform_3(%arg0: i32) -> (i32, i32) {
    %c0_i32 = arith.constant 0 : i32
    %c0_i32_0 = arith.constant 0 : i32
    %c0_i32_1 = arith.constant 0 : i32
    return %c0_i32, %c0_i32_0 : i32, i32
  }
  func.func @transform_4(%arg0: i32) -> (i32, i32) {
    %c0_i32 = arith.constant 0 : i32
    %c0_i32_0 = arith.constant 0 : i32
    %c0_i32_1 = arith.constant 0 : i32
    return %c0_i32, %c0_i32_0 : i32, i32
  }
  func.func @transform_5(%arg0: i32) -> (i32, i32) {
    %c0_i32 = arith.constant 0 : i32
    %c0_i32_0 = arith.constant 0 : i32
    %c0_i32_1 = arith.constant 0 : i32
    return %c0_i32, %c0_i32_0 : i32, i32
  }
  func.func @transform_6(%arg0: i32) -> (i32, i32) {
    %c0_i32 = arith.constant 0 : i32
    %c0_i32_0 = arith.constant 0 : i32
    %c0_i32_1 = arith.constant 0 : i32
    return %c0_i32, %c0_i32_0 : i32, i32
  }
  func.func @transform_7(%arg0: i32) -> (i32, i32) {
    %c0_i32 = arith.constant 0 : i32
    %c0_i32_0 = arith.constant 0 : i32
    %c0_i32_1 = arith.constant 0 : i32
    return %c0_i32, %c0_i32_0 : i32, i32
  }
  func.func @transform_8(%arg0: i32) -> (i32, i32) {
    %c0_i32 = arith.constant 0 : i32
    %c0_i32_0 = arith.constant 0 : i32
    %c0_i32_1 = arith.constant 0 : i32
    return %c0_i32, %c0_i32_0 : i32, i32
  }
  func.func @transform_9(%arg0: i32) -> (i32, i32) {
    %c0_i32 = arith.constant 0 : i32
    %c0_i32_0 = arith.constant 0 : i32
    %c0_i32_1 = arith.constant 0 : i32
    return %c0_i32, %c0_i32_0 : i32, i32
  }
  func.func @transform_10(%arg0: i32) -> (i32, i32) {
    %c0_i32 = arith.constant 0 : i32
    %c0_i32_0 = arith.constant 0 : i32
    %c0_i32_1 = arith.constant 0 : i32
    return %c0_i32, %c0_i32_0 : i32, i32
  }
  func.func @transform_11(%arg0: i32) -> (i32, i32, i32) {
    %c0_i32 = arith.constant 0 : i32
    %c0_i32_0 = arith.constant 0 : i32
    %c0_i32_1 = arith.constant 0 : i32
    return %arg0, %c0_i32, %c0_i32_0 : i32, i32, i32
  }
}

</mosaic_0001>

<llo_original>
// kernel: _encoder_layer_impl.1
$region0: #{_encoder_layer_impl.1}
  #allocation0 [shape = 'u32[]', space=smem, size = 0x4, offset = 0x4, fixed_abs, tag = 'smem constant byte address 0x4 - core index']
  #allocation1 [shape = 'u32[144,128]{1,0:T(1,128)}', space=vmem, size = 0x12000, scoped, tag = 'internal scratch']
  %s0 = inlined_call_operand.vmem [shape: f32[2,8,32], index: 0, kind: input, shape index: {}]
  %s1 = inlined_call_operand.vmem [shape: bf16[2,8,32], index: 1, kind: input, shape index: {}]
  %s2 = inlined_call_operand.vmem [shape: bf16[2,8,8], index: 2, kind: input, shape index: {}]
  %s3 = inlined_call_operand.vmem [shape: bf16[32,32], index: 3, kind: input, shape index: {}]
  %s4 = inlined_call_operand.vmem [shape: bf16[32,64], index: 4, kind: input, shape index: {}]
  %s5 = inlined_call_operand.vmem [shape: bf16[32,32], index: 5, kind: input, shape index: {}]
  %s6 = inlined_call_operand.hbm [shape: bf16[32,64], index: 6, kind: input, shape index: {}]
  %s7 = inlined_call_operand.vmem [shape: bf16[64,32], index: 7, kind: input, shape index: {}]
  %s8 = inlined_call_operand.vmem [shape: f32[8,32], index: 8, kind: input, shape index: {}]
  %s9 = inlined_call_operand.vmem [shape: f32[1,64], index: 9, kind: input, shape index: {}]
  %s10 = inlined_call_operand.hbm [shape: f32[1,64], index: 10, kind: input, shape index: {}]
  %s11 = inlined_call_operand.hbm [shape: f32[2,8,32], index: 11, kind: output, shape index: {}]
  %s12 = sld [smem:[#allocation0]]
  $region62: #{_encoder_layer_impl.1} parent=0
    _
  %s14 = ssub.s32 1, %s12
  %s15 = scalar_select 0, %s14, %s12
  $region1: #{_encoder_layer_impl.1} parent=0
    #allocation2 [shape = 'u8[8192]{0}', space=vmem, size = 0x2000, scoped, tag = 'input window, operand 6, single buffered']
    #allocation3 [shape = 's32[1]{0}', space=sflag, size = 0x4, scoped, tag = 'scoped memory for _encoder_layer_impl.1']
    #allocation4 [shape = 's32[1]{0}', space=sflag, size = 0x4, scoped, tag = 'scoped memory for _encoder_layer_impl.1']
    #allocation5 [shape = 'u8[512]{0}', space=vmem, size = 0x400, scoped, tag = 'input window, operand 10, single buffered']
    #allocation6 [shape = 's32[1]{0}', space=sflag, size = 0x4, scoped, tag = 'scoped memory for _encoder_layer_impl.1']
    #allocation7 [shape = 'u8[8192]{0}', space=vmem, size = 0x2000, scoped, tag = 'output window, operand 0, single buffered']
    %16 = vsyncpa [#allocation3], 0
    %17 = vsyncpa [#allocation6], 0
    %18 = vsyncpa [#allocation4], 0
    // Predicated region
    $region2: #{_encoder_layer_impl.1} parent=1 // pred_check
      _
    $region3: #{_encoder_layer_impl.1} parent=1 // pred_check_branch
      %20 = sbr.rel (0) target = $region5
    $region4: #{_encoder_layer_impl.1} parent=1 // pred_region
      _
    $region5: #{_encoder_layer_impl.1} parent=1 // pred_fallthru
      _
    // Predicated region
    $region6: #{_encoder_layer_impl.1} parent=1 // pred_check
      _
    $region7: #{_encoder_layer_impl.1} parent=1 // pred_check_branch
      %22 = sbr.rel (0) target = $region9
    $region8: #{_encoder_layer_impl.1} parent=1 // pred_region
      _
    $region9: #{_encoder_layer_impl.1} parent=1 // pred_fallthru
      _
    // Predicated region
    $region10: #{_encoder_layer_impl.1} parent=1 // pred_check
      _
    $region11: #{_encoder_layer_impl.1} parent=1 // pred_check_branch
      %24 = sbr.rel (0) target = $region13
    $region12: #{_encoder_layer_impl.1} parent=1 // pred_region
      _
    $region13: #{_encoder_layer_impl.1} parent=1 // pred_fallthru
      _
    // Predicated region
    $region14: #{_encoder_layer_impl.1} parent=1 // pred_check
      _
    $region15: #{_encoder_layer_impl.1} parent=1 // pred_check_branch
      %26 = sbr.rel (0) target = $region17
    $region16: #{_encoder_layer_impl.1} parent=1 // pred_region
      _
    $region17: #{_encoder_layer_impl.1} parent=1 // pred_fallthru
      _
    // Predicated region
    $region18: #{_encoder_layer_impl.1} parent=1 // pred_check
      _
    $region19: #{_encoder_layer_impl.1} parent=1 // pred_check_branch
      %28 = sbr.rel (0) target = $region21
    $region20: #{_encoder_layer_impl.1} parent=1 // pred_region
      _
    $region21: #{_encoder_layer_impl.1} parent=1 // pred_fallthru
      _
    // Predicated region
    $region22: #{_encoder_layer_impl.1} parent=1 // pred_check
      _
    $region23: #{_encoder_layer_impl.1} parent=1 // pred_check_branch
      %30 = sbr.rel (0) target = $region25
    $region24: #{_encoder_layer_impl.1} parent=1 // pred_region
      _
    $region25: #{_encoder_layer_impl.1} parent=1 // pred_fallthru
      _
    // Predicated region
    $region26: #{_encoder_layer_impl.1} parent=1 // pred_check
      _
    $region27: #{_encoder_layer_impl.1} parent=1 // pred_check_branch
      %32 = sbr.rel (0) target = $region29
    $region28: #{_encoder_layer_impl.1} parent=1 // pred_region
      %s34 = ssub.s32 256, 256
      %35 = vsyncadd [#allocation3], %s34
      %s36 = sshll.u32 [#allocation2], 4
      %s37 = int_to_ptr.vmem [resolvable:$true] %s36
      %42 = dma.hbm_to_vmem [thread:$0]  %s6, 256, %s37, [#allocation3], 64, 64, 4
    $region29: #{_encoder_layer_impl.1} parent=1 // pred_fallthru
      _
    // Predicated region
    $region30: #{_encoder_layer_impl.1} parent=1 // pred_check
      _
    $region31: #{_encoder_layer_impl.1} parent=1 // pred_check_branch
      %44 = sbr.rel (0) target = $region33
    $region32: #{_encoder_layer_impl.1} parent=1 // pred_region
      _
    $region33: #{_encoder_layer_impl.1} parent=1 // pred_fallthru
      _
    // Predicated region
    $region34: #{_encoder_layer_impl.1} parent=1 // pred_check
      _
    $region35: #{_encoder_layer_impl.1} parent=1 // pred_check_branch
      %46 = sbr.rel (0) target = $region37
    $region36: #{_encoder_layer_impl.1} parent=1 // pred_region
      _
    $region37: #{_encoder_layer_impl.1} parent=1 // pred_fallthru
      _
    // Predicated region
    $region38: #{_encoder_layer_impl.1} parent=1 // pred_check
      _
    $region39: #{_encoder_layer_impl.1} parent=1 // pred_check_branch
      %48 = sbr.rel (0) target = $region41
    $region40: #{_encoder_layer_impl.1} parent=1 // pred_region
      _
    $region41: #{_encoder_layer_impl.1} parent=1 // pred_fallthru
      _
    // Predicated region
    $region42: #{_encoder_layer_impl.1} parent=1 // pred_check
      _
    $region43: #{_encoder_layer_impl.1} parent=1 // pred_check_branch
      %50 = sbr.rel (0) target = $region45
    $region44: #{_encoder_layer_impl.1} parent=1 // pred_region
      %s52 = ssub.s32 16, 16
      %53 = vsyncadd [#allocation6], %s52
      %s55 = sshll.u32 [#allocation5], 4
      %s56 = int_to_ptr.vmem [resolvable:$true] %s55
      %58 = dma.hbm_to_vmem [thread:$0]  %s10, 16, %s56, [#allocation6]
    $region45: #{_encoder_layer_impl.1} parent=1 // pred_fallthru
      _
    // Predicated region
    $region46: #{_encoder_layer_impl.1} parent=1 // pred_check
      _
    $region47: #{_encoder_layer_impl.1} parent=1 // pred_check_branch
      %60 = sbr.rel (0) target = $region49
    $region48: #{_encoder_layer_impl.1} parent=1 // pred_region
      %61 = dma.done [#allocation3], 256
    $region49: #{_encoder_layer_impl.1} parent=1 // pred_fallthru
      _
    // Predicated region
    $region50: #{_encoder_layer_impl.1} parent=1 // pred_check
      _
    $region51: #{_encoder_layer_impl.1} parent=1 // pred_check_branch
      %63 = sbr.rel (0) target = $region53
    $region52: #{_encoder_layer_impl.1} parent=1 // pred_region
      %64 = dma.done [#allocation6], 16
    $region53: #{_encoder_layer_impl.1} parent=1 // pred_fallthru
      _
    %v66 = vld [vmem:[%s8] sm:$0x1]
    %v67 = vld [vmem:[%s8 + $0x1] sm:$0x1]
    %v68 = vld [vmem:[%s8 + $0x2] sm:$0x1]
    %v69 = vld [vmem:[%s8 + $0x3] sm:$0x1]
    %v70 = vld [vmem:[%s8 + $0x4] sm:$0x1]
    %v71 = vld [vmem:[%s8 + $0x5] sm:$0x1]
    %v72 = vld [vmem:[%s8 + $0x6] sm:$0x1]
    %v73 = vld [vmem:[%s0] sm:$0xff]
    %v74 = vld [vmem:[%s0 + $0x8] sm:$0xff]
    %v75 = vld [vmem:[%s1] sm:$0xf]
    %v76 = vld [vmem:[%s1 + $0x4] sm:$0xf]
    %v77 = vpack.c.bf16 %v74, %v73
    %v78 = vld [vmem:[%s3] sm:$0xf]
    %v79 = vld [vmem:[%s3 + $0x4] sm:$0xf]
    %v80 = vld [vmem:[%s3 + $0x8] sm:$0xf]
    %v81 = vld [vmem:[%s3 + $0xc] sm:$0xf]
    %v82 = vlaneseq
    %v83 = vshrl.u32 %v82, 7
    %v84 = vsub.s32 0, %v83
    %v85 = vrot.slane %v66, %v84
    %v90 = vunpack.c.l.b16 %v78
    %v91 = vunpack.c.l.b16 %v79
    %v92 = vunpack.c.l.b16 %v80
    %v93 = vunpack.c.l.b16 %v81
    %v94 = vpack.c.b16 %v91, %v90
    %v95 = vpack.c.b16 %v93, %v92
    %vm98 = vcmask 261120
    %v100 = vsel %vm98, %v77, 0
    %102 = vmatprep.subr.bf16.mxu0 0
    %103 = vmatpush1.bf16.msra.mxu0 0
    %104 = vmatprep.subr.bf16.mxu0 0
    %105 = vmatpush1.bf16.msra.mxu0 0
    %106 = vmatprep.subr.bf16.mxu0 0
    %107 = vmatpush1.bf16.msra.mxu0 0
    %108 = vmatprep.subr.bf16.mxu0 0
    %109 = vmatpush1.bf16.msra.mxu0 0
    %110 = vmatprep.subr.bf16.mxu0 0
    %111 = vmatpush1.bf16.msra.mxu0 0
    %112 = vmatprep.subr.bf16.mxu0 0
    %113 = vmatpush1.bf16.msra.mxu0 0
    %114 = vmatprep.subr.bf16.mxu0 0
    %115 = vmatpush1.bf16.msra.mxu0 %v95
    %116 = vmatprep.subr.bf16.mxu0 0
    %117 = vmatpush1.bf16.msra.mxu0 %v94
    %118 = vmatprep.subr.bf16.mxu0 0
    %119 = vmatpush2.bf16.msra.mxu0 0
    %120 = vmatprep.subr.bf16.mxu0 0
    %121 = vmatpush2.bf16.msra.mxu0 0
    %122 = vmatprep.subr.bf16.mxu0 0
    %123 = vmatpush2.bf16.msra.mxu0 0
    %124 = vmatprep.subr.bf16.mxu0 0
    %125 = vmatpush2.bf16.msra.mxu0 0
    %126 = vmatprep.subr.bf16.mxu0 0
    %127 = vmatpush2.bf16.msra.mxu0 0
    %128 = vmatprep.subr.bf16.mxu0 0
    %129 = vmatpush2.bf16.msra.mxu0 0
    %130 = vmatprep.subr.bf16.mxu0 0
    %131 = vmatpush2.bf16.msra.mxu0 0
    %132 = vmatprep.subr.bf16.mxu0 0
    %133 = vmatpush2.bf16.msra.mxu0 0
    %134 = vmatprep.mubr.bf16.mxu0 0
    %135 = vmatmul.mubr.bf16.gmra.mxu0 %v100
    %v136 = vpop.f32.mrf.mxu0
    %v137 = vadd.f32 %v85, %v136
    %v138 = vpop.f32.mrf.mxu0
    %v139 = vpop.f32.mrf.mxu0
    %v140 = vadd.f32 %v85, %v139
    %v141 = vpop.f32.mrf.mxu0
    %142 = vdwg.mxu0
    %v143 = vld [vmem:[%s4] sm:$0xf]
    %v144 = vld [vmem:[%s4 + $0x4] sm:$0xf]
    %v145 = vld [vmem:[%s4 + $0x8] sm:$0xf]
    %v146 = vld [vmem:[%s4 + $0xc] sm:$0xf]
    %v147 = vld [vmem:[%s9] sm:$0x1]
    %v149 = vlaneseq
    %v150 = vshrl.u32 %v149, 7
    %v151 = vsub.s32 0, %v150
    %v152 = vrot.slane %v147, %v151
    %v156 = vunpack.c.l.b16 %v75
    %v157 = vunpack.c.l.b16 %v76
    %v158 = vpack.c.b16 %v157, %v156
    %v163 = vunpack.c.l.b16 %v143
    %v164 = vunpack.c.l.b16 %v144
    %v165 = vunpack.c.l.b16 %v145
    %v166 = vunpack.c.l.b16 %v146
    %v167 = vpack.c.b16 %v164, %v163
    %v168 = vpack.c.b16 %v166, %v165
    %v172 = vsel %vm98, %v158, 0
    %174 = vmatprep.subr.bf16.mxu0 0
    %175 = vmatpush1.bf16.msra.mxu0 0
    %176 = vmatprep.subr.bf16.mxu0 0
    %177 = vmatpush1.bf16.msra.mxu0 0
    %178 = vmatprep.subr.bf16.mxu0 0
    %179 = vmatpush1.bf16.msra.mxu0 0
    %180 = vmatprep.subr.bf16.mxu0 0
    %181 = vmatpush1.bf16.msra.mxu0 0
    %182 = vmatprep.subr.bf16.mxu0 0
    %183 = vmatpush1.bf16.msra.mxu0 0
    %184 = vmatprep.subr.bf16.mxu0 0
    %185 = vmatpush1.bf16.msra.mxu0 0
    %186 = vmatprep.subr.bf16.mxu0 0
    %187 = vmatpush1.bf16.msra.mxu0 %v168
    %188 = vmatprep.subr.bf16.mxu0 0
    %189 = vmatpush1.bf16.msra.mxu0 %v167
    %190 = vmatprep.subr.bf16.mxu0 0
    %191 = vmatpush2.bf16.msra.mxu0 0
    %192 = vmatprep.subr.bf16.mxu0 0
    %193 = vmatpush2.bf16.msra.mxu0 0
    %194 = vmatprep.subr.bf16.mxu0 0
    %195 = vmatpush2.bf16.msra.mxu0 0
    %196 = vmatprep.subr.bf16.mxu0 0
    %197 = vmatpush2.bf16.msra.mxu0 0
    %198 = vmatprep.subr.bf16.mxu0 0
    %199 = vmatpush2.bf16.msra.mxu0 0
    %200 = vmatprep.subr.bf16.mxu0 0
    %201 = vmatpush2.bf16.msra.mxu0 0
    %202 = vmatprep.subr.bf16.mxu0 0
    %203 = vmatpush2.bf16.msra.mxu0 0
    %204 = vmatprep.subr.bf16.mxu0 0
    %205 = vmatpush2.bf16.msra.mxu0 0
    %206 = vmatprep.mubr.bf16.mxu0 0
    %207 = vmatmul.mubr.bf16.gmra.mxu0 %v172
    %v208 = vpop.f32.mrf.mxu0
    %v209 = vadd.f32 %v152, %v208
    %v210 = vpop.f32.mrf.mxu0
    %v211 = vpop.f32.mrf.mxu0
    %v212 = vadd.f32 %v152, %v211
    %v213 = vpop.f32.mrf.mxu0
    %214 = vdwg.mxu0
    %v215 = vpack.c.bf16 %v140, %v137
    %v217 = vunpack.c.l.b16 %v215
    %v218 = vunpack.c.h.b16 %v215
    %v219 = vpack.c.b16 %v217, %v217
    %v220 = vpack.c.b16 %v218, %v218
    %v221 = vpack.c.bf16 %v212, %v209
    %v223 = vunpack.c.l.b16 %v221
    %v224 = vunpack.c.h.b16 %v221
    %v225 = vpack.c.b16 %v223, %v223
    %v226 = vpack.c.b16 %v224, %v224
    %v227 = vld [vmem:[%s2] sm:$0xf]
    %v228 = vld [vmem:[%s2 + $0x4] sm:$0xf]
    %v229 = vunpack.c.l.bf16 %v227
    %v230 = vunpack.c.l.bf16 %v228
    %vm231 = vcmask 64512
    %v233 = vsel %vm231, %v219, 0
    %v236 = vsel %vm231, %v225, 0
    %238 = vmatprep.subr.bf16.mxu0 0
    %239 = vmatpush1.bf16.xpose.msra.mxu0 0
    %240 = vmatprep.subr.bf16.mxu0 0
    %241 = vmatpush1.bf16.xpose.msra.mxu0 0
    %242 = vmatprep.subr.bf16.mxu0 0
    %243 = vmatpush1.bf16.xpose.msra.mxu0 0
    %244 = vmatprep.subr.bf16.mxu0 0
    %245 = vmatpush1.bf16.xpose.msra.mxu0 0
    %246 = vmatprep.subr.bf16.mxu0 0
    %247 = vmatpush1.bf16.xpose.msra.mxu0 0
    %248 = vmatprep.subr.bf16.mxu0 0
    %249 = vmatpush1.bf16.xpose.msra.mxu0 0
    %250 = vmatprep.subr.bf16.mxu0 0
    %251 = vmatpush1.bf16.xpose.msra.mxu0 0
    %252 = vmatprep.subr.bf16.mxu0 0
    %253 = vmatpush1.bf16.xpose.msra.mxu0 %v236
    %254 = vmatprep.subr.bf16.mxu0 0
    %255 = vmatpush2.bf16.xpose.msra.mxu0 0
    %256 = vmatprep.subr.bf16.mxu0 0
    %257 = vmatpush2.bf16.xpose.msra.mxu0 0
    %258 = vmatprep.subr.bf16.mxu0 0
    %259 = vmatpush2.bf16.xpose.msra.mxu0 0
    %260 = vmatprep.subr.bf16.mxu0 0
    %261 = vmatpush2.bf16.xpose.msra.mxu0 0
    %262 = vmatprep.subr.bf16.mxu0 0
    %263 = vmatpush2.bf16.xpose.msra.mxu0 0
    %264 = vmatprep.subr.bf16.mxu0 0
    %265 = vmatpush2.bf16.xpose.msra.mxu0 0
    %266 = vmatprep.subr.bf16.mxu0 0
    %267 = vmatpush2.bf16.xpose.msra.mxu0 0
    %268 = vmatprep.subr.bf16.mxu0 0
    %269 = vmatpush2.bf16.xpose.msra.mxu0 0
    %270 = vmatprep.mubr.bf16.mxu0 0
    %271 = vmatmul.mubr.bf16.gmra.mxu0 %v233
    %v272 = vpop.f32.mrf.mxu0
    %v273 = vadd.f32 %v229, %v272
    %v274 = vpop.f32.mrf.mxu0
    %v275 = vpop.f32.mrf.mxu0
    %v276 = vpop.f32.mrf.mxu0
    %277 = vdwg.mxu0
    %v279 = vsel %vm231, %v220, 0
    %v282 = vsel %vm231, %v226, 0
    %284 = vmatprep.subr.bf16.mxu0 0
    %285 = vmatpush1.bf16.xpose.msra.mxu0 0
    %286 = vmatprep.subr.bf16.mxu0 0
    %287 = vmatpush1.bf16.xpose.msra.mxu0 0
    %288 = vmatprep.subr.bf16.mxu0 0
    %289 = vmatpush1.bf16.xpose.msra.mxu0 0
    %290 = vmatprep.subr.bf16.mxu0 0
    %291 = vmatpush1.bf16.xpose.msra.mxu0 0
    %292 = vmatprep.subr.bf16.mxu0 0
    %293 = vmatpush1.bf16.xpose.msra.mxu0 0
    %294 = vmatprep.subr.bf16.mxu0 0
    %295 = vmatpush1.bf16.xpose.msra.mxu0 0
    %296 = vmatprep.subr.bf16.mxu0 0
    %297 = vmatpush1.bf16.xpose.msra.mxu0 0
    %298 = vmatprep.subr.bf16.mxu0 0
    %299 = vmatpush1.bf16.xpose.msra.mxu0 %v282
    %300 = vmatprep.subr.bf16.mxu0 0
    %301 = vmatpush2.bf16.xpose.msra.mxu0 0
    %302 = vmatprep.subr.bf16.mxu0 0
    %303 = vmatpush2.bf16.xpose.msra.mxu0 0
    %304 = vmatprep.subr.bf16.mxu0 0
    %305 = vmatpush2.bf16.xpose.msra.mxu0 0
    %306 = vmatprep.subr.bf16.mxu0 0
    %307 = vmatpush2.bf16.xpose.msra.mxu0 0
    %308 = vmatprep.subr.bf16.mxu0 0
    %309 = vmatpush2.bf16.xpose.msra.mxu0 0
    %310 = vmatprep.subr.bf16.mxu0 0
    %311 = vmatpush2.bf16.xpose.msra.mxu0 0
    %312 = vmatprep.subr.bf16.mxu0 0
    %313 = vmatpush2.bf16.xpose.msra.mxu0 0
    %314 = vmatprep.subr.bf16.mxu0 0
    %315 = vmatpush2.bf16.xpose.msra.mxu0 0
    %316 = vmatprep.mubr.bf16.mxu0 0
    %317 = vmatmul.mubr.bf16.gmra.mxu0 %v279
    %v318 = vpop.f32.mrf.mxu0
    %v319 = vadd.f32 %v230, %v318
    %v320 = vpop.f32.mrf.mxu0
    %v321 = vpop.f32.mrf.mxu0
    %v322 = vpop.f32.mrf.mxu0
    %323 = vdwg.mxu0
    %v324 = vsel %vm231, %v273, -inf
    %325 = vmax.xlane.f32.xlu0 %v324
    %v326 = vpop.xlane.xlu0 %325
    %v327 = vsel %vm231, %v319, -inf
    %328 = vmax.xlane.f32.xlu0 %v327
    %v329 = vpop.xlane.xlu0 %328
    %v330 = vsub.f32 %v273, %v326
    %v331 = vsub.f32 %v319, %v329
    %v332 = vmul.f32 %v330, 1.442695
    %v333 = vpow.pop %v332
    %v334 = vmul.f32 %v331, 1.442695
    %v335 = vpow.pop %v334
    %v336 = vsel %vm231, %v333, 0.0
    %337 = vadd.xlane.f32.xlu0 %v336
    %v338 = vpop.xlane.xlu0 %337
    %v339 = vsel %vm231, %v335, 0.0
    %340 = vadd.xlane.f32.xlu0 %v339
    %v341 = vpop.xlane.xlu0 %340
    %v342 = vrcp.pop %v338
    %v343 = vrcp.pop %v341
    %v344 = vmul.f32 %v333, %v342
    %v345 = vmul.f32 %v335, %v343
    %v346 = vpack.c.bf16 %v344, %v344
    %v347 = vpack.c.bf16 %v345, %v345
    %348 = vrot.lane.b32.xlu0 %v225, 96
    %v349 = vpop.permute.xlu0 %348
    %v351 = vsel %vm231, %v346, 0
    %vm353 = vcmask 1043456
    %v355 = vsel %vm353, %v349, 0
    %357 = vmatprep.subr.bf16.mxu0 0
    %358 = vmatpush1.bf16.msra.mxu0 0
    %359 = vmatprep.subr.bf16.mxu0 0
    %360 = vmatpush1.bf16.msra.mxu0 0
    %361 = vmatprep.subr.bf16.mxu0 0
    %362 = vmatpush1.bf16.msra.mxu0 0
    %363 = vmatprep.subr.bf16.mxu0 0
    %364 = vmatpush1.bf16.msra.mxu0 0
    %365 = vmatprep.subr.bf16.mxu0 0
    %366 = vmatpush1.bf16.msra.mxu0 0
    %367 = vmatprep.subr.bf16.mxu0 0
    %368 = vmatpush1.bf16.msra.mxu0 0
    %369 = vmatprep.subr.bf16.mxu0 0
    %370 = vmatpush1.bf16.msra.mxu0 0
    %371 = vmatprep.subr.bf16.mxu0 0
    %372 = vmatpush1.bf16.msra.mxu0 %v355
    %373 = vmatprep.subr.bf16.mxu0 0
    %374 = vmatpush2.bf16.msra.mxu0 0
    %375 = vmatprep.subr.bf16.mxu0 0
    %376 = vmatpush2.bf16.msra.mxu0 0
    %377 = vmatprep.subr.bf16.mxu0 0
    %378 = vmatpush2.bf16.msra.mxu0 0
    %379 = vmatprep.subr.bf16.mxu0 0
    %380 = vmatpush2.bf16.msra.mxu0 0
    %381 = vmatprep.subr.bf16.mxu0 0
    %382 = vmatpush2.bf16.msra.mxu0 0
    %383 = vmatprep.subr.bf16.mxu0 0
    %384 = vmatpush2.bf16.msra.mxu0 0
    %385 = vmatprep.subr.bf16.mxu0 0
    %386 = vmatpush2.bf16.msra.mxu0 0
    %387 = vmatprep.subr.bf16.mxu0 0
    %388 = vmatpush2.bf16.msra.mxu0 0
    %389 = vmatprep.mubr.bf16.mxu0 0
    %390 = vmatmul.mubr.bf16.gmra.mxu0 %v351
    %v391 = vpop.f32.mrf.mxu0
    %v392 = vadd.f32 0.0, %v391
    %v393 = vpop.f32.mrf.mxu0
    %v394 = vpop.f32.mrf.mxu0
    %v395 = vpop.f32.mrf.mxu0
    %396 = vdwg.mxu0
    %397 = vrot.lane.b32.xlu0 %v226, 96
    %v398 = vpop.permute.xlu0 %397
    %v400 = vsel %vm231, %v347, 0
    %v403 = vsel %vm353, %v398, 0
    %405 = vmatprep.subr.bf16.mxu0 0
    %406 = vmatpush1.bf16.msra.mxu0 0
    %407 = vmatprep.subr.bf16.mxu0 0
    %408 = vmatpush1.bf16.msra.mxu0 0
    %409 = vmatprep.subr.bf16.mxu0 0
    %410 = vmatpush1.bf16.msra.mxu0 0
    %411 = vmatprep.subr.bf16.mxu0 0
    %412 = vmatpush1.bf16.msra.mxu0 0
    %413 = vmatprep.subr.bf16.mxu0 0
    %414 = vmatpush1.bf16.msra.mxu0 0
    %415 = vmatprep.subr.bf16.mxu0 0
    %416 = vmatpush1.bf16.msra.mxu0 0
    %417 = vmatprep.subr.bf16.mxu0 0
    %418 = vmatpush1.bf16.msra.mxu0 0
    %419 = vmatprep.subr.bf16.mxu0 0
    %420 = vmatpush1.bf16.msra.mxu0 %v403
    %421 = vmatprep.subr.bf16.mxu0 0
    %422 = vmatpush2.bf16.msra.mxu0 0
    %423 = vmatprep.subr.bf16.mxu0 0
    %424 = vmatpush2.bf16.msra.mxu0 0
    %425 = vmatprep.subr.bf16.mxu0 0
    %426 = vmatpush2.bf16.msra.mxu0 0
    %427 = vmatprep.subr.bf16.mxu0 0
    %428 = vmatpush2.bf16.msra.mxu0 0
    %429 = vmatprep.subr.bf16.mxu0 0
    %430 = vmatpush2.bf16.msra.mxu0 0
    %431 = vmatprep.subr.bf16.mxu0 0
    %432 = vmatpush2.bf16.msra.mxu0 0
    %433 = vmatprep.subr.bf16.mxu0 0
    %434 = vmatpush2.bf16.msra.mxu0 0
    %435 = vmatprep.subr.bf16.mxu0 0
    %436 = vmatpush2.bf16.msra.mxu0 0
    %437 = vmatprep.mubr.bf16.mxu0 0
    %438 = vmatmul.mubr.bf16.gmra.mxu0 %v400
    %v439 = vpop.f32.mrf.mxu0
    %v440 = vadd.f32 0.0, %v439
    %v441 = vpop.f32.mrf.mxu0
    %v442 = vpop.f32.mrf.mxu0
    %v443 = vpop.f32.mrf.mxu0
    %444 = vdwg.mxu0
    %v445 = vpack.c.bf16 %v440, %v392
    %v446 = vld [vmem:[%s5] sm:$0xf]
    %447 = vrot.lane.b32.xlu0 %v219, 120
    %v448 = vpop.permute.xlu0 %447
    %449 = vrot.lane.b32.xlu0 %v225, 120
    %v450 = vpop.permute.xlu0 %449
    %v452 = vsel %vm231, %v448, 0
    %v455 = vsel %vm231, %v450, 0
    %457 = vmatprep.subr.bf16.mxu0 0
    %458 = vmatpush1.bf16.xpose.msra.mxu0 0
    %459 = vmatprep.subr.bf16.mxu0 0
    %460 = vmatpush1.bf16.xpose.msra.mxu0 0
    %461 = vmatprep.subr.bf16.mxu0 0
    %462 = vmatpush1.bf16.xpose.msra.mxu0 0
    %463 = vmatprep.subr.bf16.mxu0 0
    %464 = vmatpush1.bf16.xpose.msra.mxu0 0
    %465 = vmatprep.subr.bf16.mxu0 0
    %466 = vmatpush1.bf16.xpose.msra.mxu0 0
    %467 = vmatprep.subr.bf16.mxu0 0
    %468 = vmatpush1.bf16.xpose.msra.mxu0 0
    %469 = vmatprep.subr.bf16.mxu0 0
    %470 = vmatpush1.bf16.xpose.msra.mxu0 0
    %471 = vmatprep.subr.bf16.mxu0 0
    %472 = vmatpush1.bf16.xpose.msra.mxu0 %v455
    %473 = vmatprep.subr.bf16.mxu0 0
    %474 = vmatpush2.bf16.xpose.msra.mxu0 0
    %475 = vmatprep.subr.bf16.mxu0 0
    %476 = vmatpush2.bf16.xpose.msra.mxu0 0
    %477 = vmatprep.subr.bf16.mxu0 0
    %478 = vmatpush2.bf16.xpose.msra.mxu0 0
    %479 = vmatprep.subr.bf16.mxu0 0
    %480 = vmatpush2.bf16.xpose.msra.mxu0 0
    %481 = vmatprep.subr.bf16.mxu0 0
    %482 = vmatpush2.bf16.xpose.msra.mxu0 0
    %483 = vmatprep.subr.bf16.mxu0 0
    %484 = vmatpush2.bf16.xpose.msra.mxu0 0
    %485 = vmatprep.subr.bf16.mxu0 0
    %486 = vmatpush2.bf16.xpose.msra.mxu0 0
    %487 = vmatprep.subr.bf16.mxu0 0
    %488 = vmatpush2.bf16.xpose.msra.mxu0 0
    %489 = vmatprep.mubr.bf16.mxu0 0
    %490 = vmatmul.mubr.bf16.gmra.mxu0 %v452
    %v491 = vpop.f32.mrf.mxu0
    %v492 = vadd.f32 %v229, %v491
    %v493 = vpop.f32.mrf.mxu0
    %v494 = vpop.f32.mrf.mxu0
    %v495 = vpop.f32.mrf.mxu0
    %496 = vdwg.mxu0
    %497 = vrot.lane.b32.xlu0 %v220, 120
    %v498 = vpop.permute.xlu0 %497
    %499 = vrot.lane.b32.xlu0 %v226, 120
    %v500 = vpop.permute.xlu0 %499
    %v502 = vsel %vm231, %v498, 0
    %v505 = vsel %vm231, %v500, 0
    %507 = vmatprep.subr.bf16.mxu0 0
    %508 = vmatpush1.bf16.xpose.msra.mxu0 0
    %509 = vmatprep.subr.bf16.mxu0 0
    %510 = vmatpush1.bf16.xpose.msra.mxu0 0
    %511 = vmatprep.subr.bf16.mxu0 0
    %512 = vmatpush1.bf16.xpose.msra.mxu0 0
    %513 = vmatprep.subr.bf16.mxu0 0
    %514 = vmatpush1.bf16.xpose.msra.mxu0 0
    %515 = vmatprep.subr.bf16.mxu0 0
    %516 = vmatpush1.bf16.xpose.msra.mxu0 0
    %517 = vmatprep.subr.bf16.mxu0 0
    %518 = vmatpush1.bf16.xpose.msra.mxu0 0
    %519 = vmatprep.subr.bf16.mxu0 0
    %520 = vmatpush1.bf16.xpose.msra.mxu0 0
    %521 = vmatprep.subr.bf16.mxu0 0
    %522 = vmatpush1.bf16.xpose.msra.mxu0 %v505
    %523 = vmatprep.subr.bf16.mxu0 0
    %524 = vmatpush2.bf16.xpose.msra.mxu0 0
    %525 = vmatprep.subr.bf16.mxu0 0
    %526 = vmatpush2.bf16.xpose.msra.mxu0 0
    %527 = vmatprep.subr.bf16.mxu0 0
    %528 = vmatpush2.bf16.xpose.msra.mxu0 0
    %529 = vmatprep.subr.bf16.mxu0 0
    %530 = vmatpush2.bf16.xpose.msra.mxu0 0
    %531 = vmatprep.subr.bf16.mxu0 0
    %532 = vmatpush2.bf16.xpose.msra.mxu0 0
    %533 = vmatprep.subr.bf16.mxu0 0
    %534 = vmatpush2.bf16.xpose.msra.mxu0 0
    %535 = vmatprep.subr.bf16.mxu0 0
    %536 = vmatpush2.bf16.xpose.msra.mxu0 0
    %537 = vmatprep.subr.bf16.mxu0 0
    %538 = vmatpush2.bf16.xpose.msra.mxu0 0
    %539 = vmatprep.mubr.bf16.mxu0 0
    %540 = vmatmul.mubr.bf16.gmra.mxu0 %v502
    %v541 = vpop.f32.mrf.mxu0
    %v542 = vadd.f32 %v230, %v541
    %v543 = vpop.f32.mrf.mxu0
    %v544 = vpop.f32.mrf.mxu0
    %v545 = vpop.f32.mrf.mxu0
    %546 = vdwg.mxu0
    %v547 = vsel %vm231, %v492, -inf
    %548 = vmax.xlane.f32.xlu0 %v547
    %v549 = vpop.xlane.xlu0 %548
    %v550 = vsel %vm231, %v542, -inf
    %551 = vmax.xlane.f32.xlu0 %v550
    %v552 = vpop.xlane.xlu0 %551
    %v553 = vsub.f32 %v492, %v549
    %v554 = vsub.f32 %v542, %v552
    %v555 = vmul.f32 %v553, 1.442695
    %v556 = vpow.pop %v555
    %v557 = vmul.f32 %v554, 1.442695
    %v558 = vpow.pop %v557
    %v559 = vsel %vm231, %v556, 0.0
    %560 = vadd.xlane.f32.xlu0 %v559
    %v561 = vpop.xlane.xlu0 %560
    %v562 = vsel %vm231, %v558, 0.0
    %563 = vadd.xlane.f32.xlu0 %v562
    %v564 = vpop.xlane.xlu0 %563
    %v565 = vrcp.pop %v561
    %v566 = vrcp.pop %v564
    %v567 = vmul.f32 %v556, %v565
    %v568 = vmul.f32 %v558, %v566
    %v569 = vpack.c.bf16 %v567, %v567
    %v570 = vpack.c.bf16 %v568, %v568
    %571 = vrot.lane.b32.xlu0 %v225, 88
    %v572 = vpop.permute.xlu0 %571
    %v574 = vsel %vm231, %v569, 0
    %v577 = vsel %vm353, %v572, 0
    %579 = vmatprep.subr.bf16.mxu0 0
    %580 = vmatpush1.bf16.msra.mxu0 0
    %581 = vmatprep.subr.bf16.mxu0 0
    %582 = vmatpush1.bf16.msra.mxu0 0
    %583 = vmatprep.subr.bf16.mxu0 0
    %584 = vmatpush1.bf16.msra.mxu0 0
    %585 = vmatprep.subr.bf16.mxu0 0
    %586 = vmatpush1.bf16.msra.mxu0 0
    %587 = vmatprep.subr.bf16.mxu0 0
    %588 = vmatpush1.bf16.msra.mxu0 0
    %589 = vmatprep.subr.bf16.mxu0 0
    %590 = vmatpush1.bf16.msra.mxu0 0
    %591 = vmatprep.subr.bf16.mxu0 0
    %592 = vmatpush1.bf16.msra.mxu0 0
    %593 = vmatprep.subr.bf16.mxu0 0
    %594 = vmatpush1.bf16.msra.mxu0 %v577
    %595 = vmatprep.subr.bf16.mxu0 0
    %596 = vmatpush2.bf16.msra.mxu0 0
    %597 = vmatprep.subr.bf16.mxu0 0
    %598 = vmatpush2.bf16.msra.mxu0 0
    %599 = vmatprep.subr.bf16.mxu0 0
    %600 = vmatpush2.bf16.msra.mxu0 0
    %601 = vmatprep.subr.bf16.mxu0 0
    %602 = vmatpush2.bf16.msra.mxu0 0
    %603 = vmatprep.subr.bf16.mxu0 0
    %604 = vmatpush2.bf16.msra.mxu0 0
    %605 = vmatprep.subr.bf16.mxu0 0
    %606 = vmatpush2.bf16.msra.mxu0 0
    %607 = vmatprep.subr.bf16.mxu0 0
    %608 = vmatpush2.bf16.msra.mxu0 0
    %609 = vmatprep.subr.bf16.mxu0 0
    %610 = vmatpush2.bf16.msra.mxu0 0
    %611 = vmatprep.mubr.bf16.mxu0 0
    %612 = vmatmul.mubr.bf16.gmra.mxu0 %v574
    %v613 = vpop.f32.mrf.mxu0
    %v614 = vadd.f32 0.0, %v613
    %v615 = vpop.f32.mrf.mxu0
    %v616 = vpop.f32.mrf.mxu0
    %v617 = vpop.f32.mrf.mxu0
    %618 = vdwg.mxu0
    %619 = vrot.lane.b32.xlu0 %v226, 88
    %v620 = vpop.permute.xlu0 %619
    %v622 = vsel %vm231, %v570, 0
    %v625 = vsel %vm353, %v620, 0
    %627 = vmatprep.subr.bf16.mxu0 0
    %628 = vmatpush1.bf16.msra.mxu0 0
    %629 = vmatprep.subr.bf16.mxu0 0
    %630 = vmatpush1.bf16.msra.mxu0 0
    %631 = vmatprep.subr.bf16.mxu0 0
    %632 = vmatpush1.bf16.msra.mxu0 0
    %633 = vmatprep.subr.bf16.mxu0 0
    %634 = vmatpush1.bf16.msra.mxu0 0
    %635 = vmatprep.subr.bf16.mxu0 0
    %636 = vmatpush1.bf16.msra.mxu0 0
    %637 = vmatprep.subr.bf16.mxu0 0
    %638 = vmatpush1.bf16.msra.mxu0 0
    %639 = vmatprep.subr.bf16.mxu0 0
    %640 = vmatpush1.bf16.msra.mxu0 0
    %641 = vmatprep.subr.bf16.mxu0 0
    %642 = vmatpush1.bf16.msra.mxu0 %v625
    %643 = vmatprep.subr.bf16.mxu0 0
    %644 = vmatpush2.bf16.msra.mxu0 0
    %645 = vmatprep.subr.bf16.mxu0 0
    %646 = vmatpush2.bf16.msra.mxu0 0
    %647 = vmatprep.subr.bf16.mxu0 0
    %648 = vmatpush2.bf16.msra.mxu0 0
    %649 = vmatprep.subr.bf16.mxu0 0
    %650 = vmatpush2.bf16.msra.mxu0 0
    %651 = vmatprep.subr.bf16.mxu0 0
    %652 = vmatpush2.bf16.msra.mxu0 0
    %653 = vmatprep.subr.bf16.mxu0 0
    %654 = vmatpush2.bf16.msra.mxu0 0
    %655 = vmatprep.subr.bf16.mxu0 0
    %656 = vmatpush2.bf16.msra.mxu0 0
    %657 = vmatprep.subr.bf16.mxu0 0
    %658 = vmatpush2.bf16.msra.mxu0 0
    %659 = vmatprep.mubr.bf16.mxu0 0
    %660 = vmatmul.mubr.bf16.gmra.mxu0 %v622
    %v661 = vpop.f32.mrf.mxu0
    %v662 = vadd.f32 0.0, %v661
    %v663 = vpop.f32.mrf.mxu0
    %v664 = vpop.f32.mrf.mxu0
    %v665 = vpop.f32.mrf.mxu0
    %666 = vdwg.mxu0
    %v667 = vpack.c.bf16 %v662, %v614
    %v668 = vld [vmem:[%s5 + $0x4] sm:$0xf]
    %v670 = vsel %vm231, %v667, 0
    %v673 = vsel %vm353, %v668, 0
    %675 = vmatprep.subr.bf16.mxu0 0
    %676 = vmatpush1.bf16.msra.mxu0 0
    %677 = vmatprep.subr.bf16.mxu0 0
    %678 = vmatpush1.bf16.msra.mxu0 0
    %679 = vmatprep.subr.bf16.mxu0 0
    %680 = vmatpush1.bf16.msra.mxu0 0
    %681 = vmatprep.subr.bf16.mxu0 0
    %682 = vmatpush1.bf16.msra.mxu0 0
    %683 = vmatprep.subr.bf16.mxu0 0
    %684 = vmatpush1.bf16.msra.mxu0 0
    %685 = vmatprep.subr.bf16.mxu0 0
    %686 = vmatpush1.bf16.msra.mxu0 0
    %687 = vmatprep.subr.bf16.mxu0 0
    %688 = vmatpush1.bf16.msra.mxu0 0
    %689 = vmatprep.subr.bf16.mxu0 0
    %690 = vmatpush1.bf16.msra.mxu0 %v673
    %691 = vmatprep.subr.bf16.mxu0 0
    %692 = vmatpush2.bf16.msra.mxu0 0
    %693 = vmatprep.subr.bf16.mxu0 0
    %694 = vmatpush2.bf16.msra.mxu0 0
    %695 = vmatprep.subr.bf16.mxu0 0
    %696 = vmatpush2.bf16.msra.mxu0 0
    %697 = vmatprep.subr.bf16.mxu0 0
    %698 = vmatpush2.bf16.msra.mxu0 0
    %699 = vmatprep.subr.bf16.mxu0 0
    %700 = vmatpush2.bf16.msra.mxu0 0
    %701 = vmatprep.subr.bf16.mxu0 0
    %702 = vmatpush2.bf16.msra.mxu0 0
    %703 = vmatprep.subr.bf16.mxu0 0
    %704 = vmatpush2.bf16.msra.mxu0 0
    %705 = vmatprep.subr.bf16.mxu0 0
    %706 = vmatpush2.bf16.msra.mxu0 0
    %707 = vmatprep.mubr.bf16.mxu0 0
    %708 = vmatmul.mubr.bf16.gmra.mxu0 %v670
    %v709 = vpop.f32.mrf.mxu0
    %v710 = vadd.f32 0.0, %v709
    %v711 = vpop.f32.mrf.mxu0
    %v712 = vpop.f32.mrf.mxu0
    %v713 = vadd.f32 0.0, %v712
    %v714 = vpop.f32.mrf.mxu0
    %715 = vdwg.mxu0
    %v717 = vsel %vm231, %v445, 0
    %v720 = vsel %vm353, %v446, 0
    %722 = vmatprep.subr.bf16.mxu0 0
    %723 = vmatpush1.bf16.msra.mxu0 0
    %724 = vmatprep.subr.bf16.mxu0 0
    %725 = vmatpush1.bf16.msra.mxu0 0
    %726 = vmatprep.subr.bf16.mxu0 0
    %727 = vmatpush1.bf16.msra.mxu0 0
    %728 = vmatprep.subr.bf16.mxu0 0
    %729 = vmatpush1.bf16.msra.mxu0 0
    %730 = vmatprep.subr.bf16.mxu0 0
    %731 = vmatpush1.bf16.msra.mxu0 0
    %732 = vmatprep.subr.bf16.mxu0 0
    %733 = vmatpush1.bf16.msra.mxu0 0
    %734 = vmatprep.subr.bf16.mxu0 0
    %735 = vmatpush1.bf16.msra.mxu0 0
    %736 = vmatprep.subr.bf16.mxu0 0
    %737 = vmatpush1.bf16.msra.mxu0 %v720
    %738 = vmatprep.subr.bf16.mxu0 0
    %739 = vmatpush2.bf16.msra.mxu0 0
    %740 = vmatprep.subr.bf16.mxu0 0
    %741 = vmatpush2.bf16.msra.mxu0 0
    %742 = vmatprep.subr.bf16.mxu0 0
    %743 = vmatpush2.bf16.msra.mxu0 0
    %744 = vmatprep.subr.bf16.mxu0 0
    %745 = vmatpush2.bf16.msra.mxu0 0
    %746 = vmatprep.subr.bf16.mxu0 0
    %747 = vmatpush2.bf16.msra.mxu0 0
    %748 = vmatprep.subr.bf16.mxu0 0
    %749 = vmatpush2.bf16.msra.mxu0 0
    %750 = vmatprep.subr.bf16.mxu0 0
    %751 = vmatpush2.bf16.msra.mxu0 0
    %752 = vmatprep.subr.bf16.mxu0 0
    %753 = vmatpush2.bf16.msra.mxu0 0
    %754 = vmatprep.mubr.bf16.mxu0 0
    %755 = vmatmul.mubr.bf16.gmra.mxu0 %v717
    %v756 = vpop.f32.mrf.mxu0
    %v757 = vadd.f32 %v710, %v756
    %v758 = vpop.f32.mrf.mxu0
    %v759 = vpop.f32.mrf.mxu0
    %v760 = vadd.f32 %v713, %v759
    %v761 = vpop.f32.mrf.mxu0
    %762 = vdwg.mxu0
    %763 = vrot.lane.b32.xlu0 %v219, 112
    %v764 = vpop.permute.xlu0 %763
    %765 = vrot.lane.b32.xlu0 %v225, 112
    %v766 = vpop.permute.xlu0 %765
    %v768 = vsel %vm231, %v764, 0
    %v771 = vsel %vm231, %v766, 0
    %773 = vmatprep.subr.bf16.mxu0 0
    %774 = vmatpush1.bf16.xpose.msra.mxu0 0
    %775 = vmatprep.subr.bf16.mxu0 0
    %776 = vmatpush1.bf16.xpose.msra.mxu0 0
    %777 = vmatprep.subr.bf16.mxu0 0
    %778 = vmatpush1.bf16.xpose.msra.mxu0 0
    %779 = vmatprep.subr.bf16.mxu0 0
    %780 = vmatpush1.bf16.xpose.msra.mxu0 0
    %781 = vmatprep.subr.bf16.mxu0 0
    %782 = vmatpush1.bf16.xpose.msra.mxu0 0
    %783 = vmatprep.subr.bf16.mxu0 0
    %784 = vmatpush1.bf16.xpose.msra.mxu0 0
    %785 = vmatprep.subr.bf16.mxu0 0
    %786 = vmatpush1.bf16.xpose.msra.mxu0 0
    %787 = vmatprep.subr.bf16.mxu0 0
    %788 = vmatpush1.bf16.xpose.msra.mxu0 %v771
    %789 = vmatprep.subr.bf16.mxu0 0
    %790 = vmatpush2.bf16.xpose.msra.mxu0 0
    %791 = vmatprep.subr.bf16.mxu0 0
    %792 = vmatpush2.bf16.xpose.msra.mxu0 0
    %793 = vmatprep.subr.bf16.mxu0 0
    %794 = vmatpush2.bf16.xpose.msra.mxu0 0
    %795 = vmatprep.subr.bf16.mxu0 0
    %796 = vmatpush2.bf16.xpose.msra.mxu0 0
    %797 = vmatprep.subr.bf16.mxu0 0
    %798 = vmatpush2.bf16.xpose.msra.mxu0 0
    %799 = vmatprep.subr.bf16.mxu0 0
    %800 = vmatpush2.bf16.xpose.msra.mxu0 0
    %801 = vmatprep.subr.bf16.mxu0 0
    %802 = vmatpush2.bf16.xpose.msra.mxu0 0
    %803 = vmatprep.subr.bf16.mxu0 0
    %804 = vmatpush2.bf16.xpose.msra.mxu0 0
    %805 = vmatprep.mubr.bf16.mxu0 0
    %806 = vmatmul.mubr.bf16.gmra.mxu0 %v768
    %v807 = vpop.f32.mrf.mxu0
    %v808 = vadd.f32 %v229, %v807
    %v809 = vpop.f32.mrf.mxu0
    %v810 = vpop.f32.mrf.mxu0
    %v811 = vpop.f32.mrf.mxu0
    %812 = vdwg.mxu0
    %813 = vrot.lane.b32.xlu0 %v220, 112
    %v814 = vpop.permute.xlu0 %813
    %815 = vrot.lane.b32.xlu0 %v226, 112
    %v816 = vpop.permute.xlu0 %815
    %v818 = vsel %vm231, %v814, 0
    %v821 = vsel %vm231, %v816, 0
    %823 = vmatprep.subr.bf16.mxu0 0
    %824 = vmatpush1.bf16.xpose.msra.mxu0 0
    %825 = vmatprep.subr.bf16.mxu0 0
    %826 = vmatpush1.bf16.xpose.msra.mxu0 0
    %827 = vmatprep.subr.bf16.mxu0 0
    %828 = vmatpush1.bf16.xpose.msra.mxu0 0
    %829 = vmatprep.subr.bf16.mxu0 0
    %830 = vmatpush1.bf16.xpose.msra.mxu0 0
    %831 = vmatprep.subr.bf16.mxu0 0
    %832 = vmatpush1.bf16.xpose.msra.mxu0 0
    %833 = vmatprep.subr.bf16.mxu0 0
    %834 = vmatpush1.bf16.xpose.msra.mxu0 0
    %835 = vmatprep.subr.bf16.mxu0 0
    %836 = vmatpush1.bf16.xpose.msra.mxu0 0
    %837 = vmatprep.subr.bf16.mxu0 0
    %838 = vmatpush1.bf16.xpose.msra.mxu0 %v821
    %839 = vmatprep.subr.bf16.mxu0 0
    %840 = vmatpush2.bf16.xpose.msra.mxu0 0
    %841 = vmatprep.subr.bf16.mxu0 0
    %842 = vmatpush2.bf16.xpose.msra.mxu0 0
    %843 = vmatprep.subr.bf16.mxu0 0
    %844 = vmatpush2.bf16.xpose.msra.mxu0 0
    %845 = vmatprep.subr.bf16.mxu0 0
    %846 = vmatpush2.bf16.xpose.msra.mxu0 0
    %847 = vmatprep.subr.bf16.mxu0 0
    %848 = vmatpush2.bf16.xpose.msra.mxu0 0
    %849 = vmatprep.subr.bf16.mxu0 0
    %850 = vmatpush2.bf16.xpose.msra.mxu0 0
    %851 = vmatprep.subr.bf16.mxu0 0
    %852 = vmatpush2.bf16.xpose.msra.mxu0 0
    %853 = vmatprep.subr.bf16.mxu0 0
    %854 = vmatpush2.bf16.xpose.msra.mxu0 0
    %855 = vmatprep.mubr.bf16.mxu0 0
    %856 = vmatmul.mubr.bf16.gmra.mxu0 %v818
    %v857 = vpop.f32.mrf.mxu0
    %v858 = vadd.f32 %v230, %v857
    %v859 = vpop.f32.mrf.mxu0
    %v860 = vpop.f32.mrf.mxu0
    %v861 = vpop.f32.mrf.mxu0
    %862 = vdwg.mxu0
    %v863 = vsel %vm231, %v808, -inf
    %864 = vmax.xlane.f32.xlu0 %v863
    %v865 = vpop.xlane.xlu0 %864
    %v866 = vsel %vm231, %v858, -inf
    %867 = vmax.xlane.f32.xlu0 %v866
    %v868 = vpop.xlane.xlu0 %867
    %v869 = vsub.f32 %v808, %v865
    %v870 = vsub.f32 %v858, %v868
    %v871 = vmul.f32 %v869, 1.442695
    %v872 = vpow.pop %v871
    %v873 = vmul.f32 %v870, 1.442695
    %v874 = vpow.pop %v873
    %v875 = vsel %vm231, %v872, 0.0
    %876 = vadd.xlane.f32.xlu0 %v875
    %v877 = vpop.xlane.xlu0 %876
    %v878 = vsel %vm231, %v874, 0.0
    %879 = vadd.xlane.f32.xlu0 %v878
    %v880 = vpop.xlane.xlu0 %879
    %v881 = vrcp.pop %v877
    %v882 = vrcp.pop %v880
    %v883 = vmul.f32 %v872, %v881
    %v884 = vmul.f32 %v874, %v882
    %v885 = vpack.c.bf16 %v883, %v883
    %v886 = vpack.c.bf16 %v884, %v884
    %887 = vrot.lane.b32.xlu0 %v225, 80
    %v888 = vpop.permute.xlu0 %887
    %v890 = vsel %vm231, %v885, 0
    %v893 = vsel %vm353, %v888, 0
    %895 = vmatprep.subr.bf16.mxu0 0
    %896 = vmatpush1.bf16.msra.mxu0 0
    %897 = vmatprep.subr.bf16.mxu0 0
    %898 = vmatpush1.bf16.msra.mxu0 0
    %899 = vmatprep.subr.bf16.mxu0 0
    %900 = vmatpush1.bf16.msra.mxu0 0
    %901 = vmatprep.subr.bf16.mxu0 0
    %902 = vmatpush1.bf16.msra.mxu0 0
    %903 = vmatprep.subr.bf16.mxu0 0
    %904 = vmatpush1.bf16.msra.mxu0 0
    %905 = vmatprep.subr.bf16.mxu0 0
    %906 = vmatpush1.bf16.msra.mxu0 0
    %907 = vmatprep.subr.bf16.mxu0 0
    %908 = vmatpush1.bf16.msra.mxu0 0
    %909 = vmatprep.subr.bf16.mxu0 0
    %910 = vmatpush1.bf16.msra.mxu0 %v893
    %911 = vmatprep.subr.bf16.mxu0 0
    %912 = vmatpush2.bf16.msra.mxu0 0
    %913 = vmatprep.subr.bf16.mxu0 0
    %914 = vmatpush2.bf16.msra.mxu0 0
    %915 = vmatprep.subr.bf16.mxu0 0
    %916 = vmatpush2.bf16.msra.mxu0 0
    %917 = vmatprep.subr.bf16.mxu0 0
    %918 = vmatpush2.bf16.msra.mxu0 0
    %919 = vmatprep.subr.bf16.mxu0 0
    %920 = vmatpush2.bf16.msra.mxu0 0
    %921 = vmatprep.subr.bf16.mxu0 0
    %922 = vmatpush2.bf16.msra.mxu0 0
    %923 = vmatprep.subr.bf16.mxu0 0
    %924 = vmatpush2.bf16.msra.mxu0 0
    %925 = vmatprep.subr.bf16.mxu0 0
    %926 = vmatpush2.bf16.msra.mxu0 0
    %927 = vmatprep.mubr.bf16.mxu0 0
    %928 = vmatmul.mubr.bf16.gmra.mxu0 %v890
    %v929 = vpop.f32.mrf.mxu0
    %v930 = vadd.f32 0.0, %v929
    %v931 = vpop.f32.mrf.mxu0
    %v932 = vpop.f32.mrf.mxu0
    %v933 = vpop.f32.mrf.mxu0
    %934 = vdwg.mxu0
    %935 = vrot.lane.b32.xlu0 %v226, 80
    %v936 = vpop.permute.xlu0 %935
    %v938 = vsel %vm231, %v886, 0
    %v941 = vsel %vm353, %v936, 0
    %943 = vmatprep.subr.bf16.mxu0 0
    %944 = vmatpush1.bf16.msra.mxu0 0
    %945 = vmatprep.subr.bf16.mxu0 0
    %946 = vmatpush1.bf16.msra.mxu0 0
    %947 = vmatprep.subr.bf16.mxu0 0
    %948 = vmatpush1.bf16.msra.mxu0 0
    %949 = vmatprep.subr.bf16.mxu0 0
    %950 = vmatpush1.bf16.msra.mxu0 0
    %951 = vmatprep.subr.bf16.mxu0 0
    %952 = vmatpush1.bf16.msra.mxu0 0
    %953 = vmatprep.subr.bf16.mxu0 0
    %954 = vmatpush1.bf16.msra.mxu0 0
    %955 = vmatprep.subr.bf16.mxu0 0
    %956 = vmatpush1.bf16.msra.mxu0 0
    %957 = vmatprep.subr.bf16.mxu0 0
    %958 = vmatpush1.bf16.msra.mxu0 %v941
    %959 = vmatprep.subr.bf16.mxu0 0
    %960 = vmatpush2.bf16.msra.mxu0 0
    %961 = vmatprep.subr.bf16.mxu0 0
    %962 = vmatpush2.bf16.msra.mxu0 0
    %963 = vmatprep.subr.bf16.mxu0 0
    %964 = vmatpush2.bf16.msra.mxu0 0
    %965 = vmatprep.subr.bf16.mxu0 0
    %966 = vmatpush2.bf16.msra.mxu0 0
    %967 = vmatprep.subr.bf16.mxu0 0
    %968 = vmatpush2.bf16.msra.mxu0 0
    %969 = vmatprep.subr.bf16.mxu0 0
    %970 = vmatpush2.bf16.msra.mxu0 0
    %971 = vmatprep.subr.bf16.mxu0 0
    %972 = vmatpush2.bf16.msra.mxu0 0
    %973 = vmatprep.subr.bf16.mxu0 0
    %974 = vmatpush2.bf16.msra.mxu0 0
    %975 = vmatprep.mubr.bf16.mxu0 0
    %976 = vmatmul.mubr.bf16.gmra.mxu0 %v938
    %v977 = vpop.f32.mrf.mxu0
    %v978 = vadd.f32 0.0, %v977
    %v979 = vpop.f32.mrf.mxu0
    %v980 = vpop.f32.mrf.mxu0
    %v981 = vpop.f32.mrf.mxu0
    %982 = vdwg.mxu0
    %v983 = vpack.c.bf16 %v978, %v930
    %v984 = vld [vmem:[%s5 + $0x8] sm:$0xf]
    %v986 = vsel %vm231, %v983, 0
    %v989 = vsel %vm353, %v984, 0
    %991 = vmatprep.subr.bf16.mxu0 0
    %992 = vmatpush1.bf16.msra.mxu0 0
    %993 = vmatprep.subr.bf16.mxu0 0
    %994 = vmatpush1.bf16.msra.mxu0 0
    %995 = vmatprep.subr.bf16.mxu0 0
    %996 = vmatpush1.bf16.msra.mxu0 0
    %997 = vmatprep.subr.bf16.mxu0 0
    %998 = vmatpush1.bf16.msra.mxu0 0
    %999 = vmatprep.subr.bf16.mxu0 0
    %1000 = vmatpush1.bf16.msra.mxu0 0
    %1001 = vmatprep.subr.bf16.mxu0 0
    %1002 = vmatpush1.bf16.msra.mxu0 0
    %1003 = vmatprep.subr.bf16.mxu0 0
    %1004 = vmatpush1.bf16.msra.mxu0 0
    %1005 = vmatprep.subr.bf16.mxu0 0
    %1006 = vmatpush1.bf16.msra.mxu0 %v989
    %1007 = vmatprep.subr.bf16.mxu0 0
    %1008 = vmatpush2.bf16.msra.mxu0 0
    %1009 = vmatprep.subr.bf16.mxu0 0
    %1010 = vmatpush2.bf16.msra.mxu0 0
    %1011 = vmatprep.subr.bf16.mxu0 0
    %1012 = vmatpush2.bf16.msra.mxu0 0
    %1013 = vmatprep.subr.bf16.mxu0 0
    %1014 = vmatpush2.bf16.msra.mxu0 0
    %1015 = vmatprep.subr.bf16.mxu0 0
    %1016 = vmatpush2.bf16.msra.mxu0 0
    %1017 = vmatprep.subr.bf16.mxu0 0
    %1018 = vmatpush2.bf16.msra.mxu0 0
    %1019 = vmatprep.subr.bf16.mxu0 0
    %1020 = vmatpush2.bf16.msra.mxu0 0
    %1021 = vmatprep.subr.bf16.mxu0 0
    %1022 = vmatpush2.bf16.msra.mxu0 0
    %1023 = vmatprep.mubr.bf16.mxu0 0
    %1024 = vmatmul.mubr.bf16.gmra.mxu0 %v986
    %v1025 = vpop.f32.mrf.mxu0
    %v1026 = vadd.f32 0.0, %v1025
    %v1027 = vpop.f32.mrf.mxu0
    %v1028 = vpop.f32.mrf.mxu0
    %v1029 = vadd.f32 0.0, %v1028
    %v1030 = vpop.f32.mrf.mxu0
    %1031 = vdwg.mxu0
    %v1032 = vadd.f32 %v757, %v1026
    %v1033 = vadd.f32 %v760, %v1029
    %1034 = vrot.lane.b32.xlu0 %v219, 104
    %v1035 = vpop.permute.xlu0 %1034
    %1036 = vrot.lane.b32.xlu0 %v225, 104
    %v1037 = vpop.permute.xlu0 %1036
    %v1039 = vsel %vm231, %v1035, 0
    %v1042 = vsel %vm231, %v1037, 0
    %1044 = vmatprep.subr.bf16.mxu0 0
    %1045 = vmatpush1.bf16.xpose.msra.mxu0 0
    %1046 = vmatprep.subr.bf16.mxu0 0
    %1047 = vmatpush1.bf16.xpose.msra.mxu0 0
    %1048 = vmatprep.subr.bf16.mxu0 0
    %1049 = vmatpush1.bf16.xpose.msra.mxu0 0
    %1050 = vmatprep.subr.bf16.mxu0 0
    %1051 = vmatpush1.bf16.xpose.msra.mxu0 0
    %1052 = vmatprep.subr.bf16.mxu0 0
    %1053 = vmatpush1.bf16.xpose.msra.mxu0 0
    %1054 = vmatprep.subr.bf16.mxu0 0
    %1055 = vmatpush1.bf16.xpose.msra.mxu0 0
    %1056 = vmatprep.subr.bf16.mxu0 0
    %1057 = vmatpush1.bf16.xpose.msra.mxu0 0
    %1058 = vmatprep.subr.bf16.mxu0 0
    %1059 = vmatpush1.bf16.xpose.msra.mxu0 %v1042
    %1060 = vmatprep.subr.bf16.mxu0 0
    %1061 = vmatpush2.bf16.xpose.msra.mxu0 0
    %1062 = vmatprep.subr.bf16.mxu0 0
    %1063 = vmatpush2.bf16.xpose.msra.mxu0 0
    %1064 = vmatprep.subr.bf16.mxu0 0
    %1065 = vmatpush2.bf16.xpose.msra.mxu0 0
    %1066 = vmatprep.subr.bf16.mxu0 0
    %1067 = vmatpush2.bf16.xpose.msra.mxu0 0
    %1068 = vmatprep.subr.bf16.mxu0 0
    %1069 = vmatpush2.bf16.xpose.msra.mxu0 0
    %1070 = vmatprep.subr.bf16.mxu0 0
    %1071 = vmatpush2.bf16.xpose.msra.mxu0 0
    %1072 = vmatprep.subr.bf16.mxu0 0
    %1073 = vmatpush2.bf16.xpose.msra.mxu0 0
    %1074 = vmatprep.subr.bf16.mxu0 0
    %1075 = vmatpush2.bf16.xpose.msra.mxu0 0
    %1076 = vmatprep.mubr.bf16.mxu0 0
    %1077 = vmatmul.mubr.bf16.gmra.mxu0 %v1039
    %v1078 = vpop.f32.mrf.mxu0
    %v1079 = vadd.f32 %v229, %v1078
    %v1080 = vpop.f32.mrf.mxu0
    %v1081 = vpop.f32.mrf.mxu0
    %v1082 = vpop.f32.mrf.mxu0
    %1083 = vdwg.mxu0
    %1084 = vrot.lane.b32.xlu0 %v220, 104
    %v1085 = vpop.permute.xlu0 %1084
    %1086 = vrot.lane.b32.xlu0 %v226, 104
    %v1087 = vpop.permute.xlu0 %1086
    %v1089 = vsel %vm231, %v1085, 0
    %v1092 = vsel %vm231, %v1087, 0
    %1094 = vmatprep.subr.bf16.mxu0 0
    %1095 = vmatpush1.bf16.xpose.msra.mxu0 0
    %1096 = vmatprep.subr.bf16.mxu0 0
    %1097 = vmatpush1.bf16.xpose.msra.mxu0 0
    %1098 = vmatprep.subr.bf16.mxu0 0
    %1099 = vmatpush1.bf16.xpose.msra.mxu0 0
    %1100 = vmatprep.subr.bf16.mxu0 0
    %1101 = vmatpush1.bf16.xpose.msra.mxu0 0
    %1102 = vmatprep.subr.bf16.mxu0 0
    %1103 = vmatpush1.bf16.xpose.msra.mxu0 0
    %1104 = vmatprep.subr.bf16.mxu0 0
    %1105 = vmatpush1.bf16.xpose.msra.mxu0 0
    %1106 = vmatprep.subr.bf16.mxu0 0
    %1107 = vmatpush1.bf16.xpose.msra.mxu0 0
    %1108 = vmatprep.subr.bf16.mxu0 0
    %1109 = vmatpush1.bf16.xpose.msra.mxu0 %v1092
    %1110 = vmatprep.subr.bf16.mxu0 0
    %1111 = vmatpush2.bf16.xpose.msra.mxu0 0
    %1112 = vmatprep.subr.bf16.mxu0 0
    %1113 = vmatpush2.bf16.xpose.msra.mxu0 0
    %1114 = vmatprep.subr.bf16.mxu0 0
    %1115 = vmatpush2.bf16.xpose.msra.mxu0 0
    %1116 = vmatprep.subr.bf16.mxu0 0
    %1117 = vmatpush2.bf16.xpose.msra.mxu0 0
    %1118 = vmatprep.subr.bf16.mxu0 0
    %1119 = vmatpush2.bf16.xpose.msra.mxu0 0
    %1120 = vmatprep.subr.bf16.mxu0 0
    %1121 = vmatpush2.bf16.xpose.msra.mxu0 0
    %1122 = vmatprep.subr.bf16.mxu0 0
    %1123 = vmatpush2.bf16.xpose.msra.mxu0 0
    %1124 = vmatprep.subr.bf16.mxu0 0
    %1125 = vmatpush2.bf16.xpose.msra.mxu0 0
    %1126 = vmatprep.mubr.bf16.mxu0 0
    %1127 = vmatmul.mubr.bf16.gmra.mxu0 %v1089
    %v1128 = vpop.f32.mrf.mxu0
    %v1129 = vadd.f32 %v230, %v1128
    %v1130 = vpop.f32.mrf.mxu0
    %v1131 = vpop.f32.mrf.mxu0
    %v1132 = vpop.f32.mrf.mxu0
    %1133 = vdwg.mxu0
    %v1134 = vsel %vm231, %v1079, -inf
    %1135 = vmax.xlane.f32.xlu0 %v1134
    %v1136 = vpop.xlane.xlu0 %1135
    %v1137 = vsel %vm231, %v1129, -inf
    %1138 = vmax.xlane.f32.xlu0 %v1137
    %v1139 = vpop.xlane.xlu0 %1138
    %v1140 = vsub.f32 %v1079, %v1136
    %v1141 = vsub.f32 %v1129, %v1139
    %v1142 = vmul.f32 %v1140, 1.442695
    %v1143 = vpow.pop %v1142
    %v1144 = vmul.f32 %v1141, 1.442695
    %v1145 = vpow.pop %v1144
    %v1146 = vsel %vm231, %v1143, 0.0
    %1147 = vadd.xlane.f32.xlu0 %v1146
    %v1148 = vpop.xlane.xlu0 %1147
    %v1149 = vsel %vm231, %v1145, 0.0
    %1150 = vadd.xlane.f32.xlu0 %v1149
    %v1151 = vpop.xlane.xlu0 %1150
    %v1152 = vrcp.pop %v1148
    %v1153 = vrcp.pop %v1151
    %v1154 = vmul.f32 %v1143, %v1152
    %v1155 = vmul.f32 %v1145, %v1153
    %v1156 = vpack.c.bf16 %v1154, %v1154
    %v1157 = vpack.c.bf16 %v1155, %v1155
    %1158 = vrot.lane.b32.xlu0 %v225, 72
    %v1159 = vpop.permute.xlu0 %1158
    %v1161 = vsel %vm231, %v1156, 0
    %v1164 = vsel %vm353, %v1159, 0
    %1166 = vmatprep.subr.bf16.mxu0 0
    %1167 = vmatpush1.bf16.msra.mxu0 0
    %1168 = vmatprep.subr.bf16.mxu0 0
    %1169 = vmatpush1.bf16.msra.mxu0 0
    %1170 = vmatprep.subr.bf16.mxu0 0
    %1171 = vmatpush1.bf16.msra.mxu0 0
    %1172 = vmatprep.subr.bf16.mxu0 0
    %1173 = vmatpush1.bf16.msra.mxu0 0
    %1174 = vmatprep.subr.bf16.mxu0 0
    %1175 = vmatpush1.bf16.msra.mxu0 0
    %1176 = vmatprep.subr.bf16.mxu0 0
    %1177 = vmatpush1.bf16.msra.mxu0 0
    %1178 = vmatprep.subr.bf16.mxu0 0
    %1179 = vmatpush1.bf16.msra.mxu0 0
    %1180 = vmatprep.subr.bf16.mxu0 0
    %1181 = vmatpush1.bf16.msra.mxu0 %v1164
    %1182 = vmatprep.subr.bf16.mxu0 0
    %1183 = vmatpush2.bf16.msra.mxu0 0
    %1184 = vmatprep.subr.bf16.mxu0 0
    %1185 = vmatpush2.bf16.msra.mxu0 0
    %1186 = vmatprep.subr.bf16.mxu0 0
    %1187 = vmatpush2.bf16.msra.mxu0 0
    %1188 = vmatprep.subr.bf16.mxu0 0
    %1189 = vmatpush2.bf16.msra.mxu0 0
    %1190 = vmatprep.subr.bf16.mxu0 0
    %1191 = vmatpush2.bf16.msra.mxu0 0
    %1192 = vmatprep.subr.bf16.mxu0 0
    %1193 = vmatpush2.bf16.msra.mxu0 0
    %1194 = vmatprep.subr.bf16.mxu0 0
    %1195 = vmatpush2.bf16.msra.mxu0 0
    %1196 = vmatprep.subr.bf16.mxu0 0
    %1197 = vmatpush2.bf16.msra.mxu0 0
    %1198 = vmatprep.mubr.bf16.mxu0 0
    %1199 = vmatmul.mubr.bf16.gmra.mxu0 %v1161
    %v1200 = vpop.f32.mrf.mxu0
    %v1201 = vadd.f32 0.0, %v1200
    %v1202 = vpop.f32.mrf.mxu0
    %v1203 = vpop.f32.mrf.mxu0
    %v1204 = vpop.f32.mrf.mxu0
    %1205 = vdwg.mxu0
    %1206 = vrot.lane.b32.xlu0 %v226, 72
    %v1207 = vpop.permute.xlu0 %1206
    %v1209 = vsel %vm231, %v1157, 0
    %v1212 = vsel %vm353, %v1207, 0
    %1214 = vmatprep.subr.bf16.mxu0 0
    %1215 = vmatpush1.bf16.msra.mxu0 0
    %1216 = vmatprep.subr.bf16.mxu0 0
    %1217 = vmatpush1.bf16.msra.mxu0 0
    %1218 = vmatprep.subr.bf16.mxu0 0
    %1219 = vmatpush1.bf16.msra.mxu0 0
    %1220 = vmatprep.subr.bf16.mxu0 0
    %1221 = vmatpush1.bf16.msra.mxu0 0
    %1222 = vmatprep.subr.bf16.mxu0 0
    %1223 = vmatpush1.bf16.msra.mxu0 0
    %1224 = vmatprep.subr.bf16.mxu0 0
    %1225 = vmatpush1.bf16.msra.mxu0 0
    %1226 = vmatprep.subr.bf16.mxu0 0
    %1227 = vmatpush1.bf16.msra.mxu0 0
    %1228 = vmatprep.subr.bf16.mxu0 0
    %1229 = vmatpush1.bf16.msra.mxu0 %v1212
    %1230 = vmatprep.subr.bf16.mxu0 0
    %1231 = vmatpush2.bf16.msra.mxu0 0
    %1232 = vmatprep.subr.bf16.mxu0 0
    %1233 = vmatpush2.bf16.msra.mxu0 0
    %1234 = vmatprep.subr.bf16.mxu0 0
    %1235 = vmatpush2.bf16.msra.mxu0 0
    %1236 = vmatprep.subr.bf16.mxu0 0
    %1237 = vmatpush2.bf16.msra.mxu0 0
    %1238 = vmatprep.subr.bf16.mxu0 0
    %1239 = vmatpush2.bf16.msra.mxu0 0
    %1240 = vmatprep.subr.bf16.mxu0 0
    %1241 = vmatpush2.bf16.msra.mxu0 0
    %1242 = vmatprep.subr.bf16.mxu0 0
    %1243 = vmatpush2.bf16.msra.mxu0 0
    %1244 = vmatprep.subr.bf16.mxu0 0
    %1245 = vmatpush2.bf16.msra.mxu0 0
    %1246 = vmatprep.mubr.bf16.mxu0 0
    %1247 = vmatmul.mubr.bf16.gmra.mxu0 %v1209
    %v1248 = vpop.f32.mrf.mxu0
    %v1249 = vadd.f32 0.0, %v1248
    %v1250 = vpop.f32.mrf.mxu0
    %v1251 = vpop.f32.mrf.mxu0
    %v1252 = vpop.f32.mrf.mxu0
    %1253 = vdwg.mxu0
    %v1254 = vpack.c.bf16 %v1249, %v1201
    %v1255 = vld [vmem:[%s5 + $0xc] sm:$0xf]
    %v1257 = vsel %vm231, %v1254, 0
    %v1260 = vsel %vm353, %v1255, 0
    %1262 = vmatprep.subr.bf16.mxu0 0
    %1263 = vmatpush1.bf16.msra.mxu0 0
    %1264 = vmatprep.subr.bf16.mxu0 0
    %1265 = vmatpush1.bf16.msra.mxu0 0
    %1266 = vmatprep.subr.bf16.mxu0 0
    %1267 = vmatpush1.bf16.msra.mxu0 0
    %1268 = vmatprep.subr.bf16.mxu0 0
    %1269 = vmatpush1.bf16.msra.mxu0 0
    %1270 = vmatprep.subr.bf16.mxu0 0
    %1271 = vmatpush1.bf16.msra.mxu0 0
    %1272 = vmatprep.subr.bf16.mxu0 0
    %1273 = vmatpush1.bf16.msra.mxu0 0
    %1274 = vmatprep.subr.bf16.mxu0 0
    %1275 = vmatpush1.bf16.msra.mxu0 0
    %1276 = vmatprep.subr.bf16.mxu0 0
    %1277 = vmatpush1.bf16.msra.mxu0 %v1260
    %1278 = vmatprep.subr.bf16.mxu0 0
    %1279 = vmatpush2.bf16.msra.mxu0 0
    %1280 = vmatprep.subr.bf16.mxu0 0
    %1281 = vmatpush2.bf16.msra.mxu0 0
    %1282 = vmatprep.subr.bf16.mxu0 0
    %1283 = vmatpush2.bf16.msra.mxu0 0
    %1284 = vmatprep.subr.bf16.mxu0 0
    %1285 = vmatpush2.bf16.msra.mxu0 0
    %1286 = vmatprep.subr.bf16.mxu0 0
    %1287 = vmatpush2.bf16.msra.mxu0 0
    %1288 = vmatprep.subr.bf16.mxu0 0
    %1289 = vmatpush2.bf16.msra.mxu0 0
    %1290 = vmatprep.subr.bf16.mxu0 0
    %1291 = vmatpush2.bf16.msra.mxu0 0
    %1292 = vmatprep.subr.bf16.mxu0 0
    %1293 = vmatpush2.bf16.msra.mxu0 0
    %1294 = vmatprep.mubr.bf16.mxu0 0
    %1295 = vmatmul.mubr.bf16.gmra.mxu0 %v1257
    %v1296 = vpop.f32.mrf.mxu0
    %v1297 = vadd.f32 0.0, %v1296
    %v1298 = vpop.f32.mrf.mxu0
    %v1299 = vpop.f32.mrf.mxu0
    %v1300 = vadd.f32 0.0, %v1299
    %v1301 = vpop.f32.mrf.mxu0
    %1302 = vdwg.mxu0
    %v1303 = vadd.f32 %v1032, %v1297
    %v1304 = vadd.f32 %v1033, %v1300
    %v1305 = vlaneseq
    %v1306 = vshrl.u32 %v1305, 7
    %v1307 = vsub.s32 0, %v1306
    %v1308 = vrot.slane %v67, %v1307
    %v1309 = vadd.f32 %v1303, %v1308
    %v1310 = vadd.f32 %v1304, %v1308
    %v1311 = vadd.f32 %v1309, %v73
    %v1312 = vadd.f32 %v1310, %v74
    %v1313 = vsel %vm98, %v1311, 0.0
    %1314 = vadd.xlane.f32.xlu0 %v1313
    %v1315 = vpop.xlane.xlu0 %1314
    %v1316 = vsel %vm98, %v1312, 0.0
    %1317 = vadd.xlane.f32.xlu0 %v1316
    %v1318 = vpop.xlane.xlu0 %1317
    %v1319 = vrcp.pop 32.0
    %v1320 = vmul.f32 %v1315, %v1319
    %v1321 = vmul.f32 %v1318, %v1319
    %v1322 = vsub.f32 %v1311, %v1320
    %v1323 = vsub.f32 %v1312, %v1321
    %v1324 = vmul.f32 %v1322, %v1322
    %v1325 = vmul.f32 %v1323, %v1323
    %v1326 = vsel %vm98, %v1324, 0.0
    %1327 = vadd.xlane.f32.xlu0 %v1326
    %v1328 = vpop.xlane.xlu0 %1327
    %v1329 = vsel %vm98, %v1325, 0.0
    %1330 = vadd.xlane.f32.xlu0 %v1329
    %v1331 = vpop.xlane.xlu0 %1330
    %v1332 = vmul.f32 %v1328, %v1319
    %v1333 = vmul.f32 %v1331, %v1319
    %v1334 = vadd.f32 %v1332, 1e-05
    %v1335 = vadd.f32 %v1333, 1e-05
    %v1336 = vrsqrt.pop %v1334
    %v1337 = vrsqrt.pop %v1335
    %v1338 = vmul.f32 %v1322, %v1336
    %v1339 = vmul.f32 %v1323, %v1337
    %v1340 = vlaneseq
    %v1341 = vshrl.u32 %v1340, 7
    %v1342 = vsub.s32 0, %v1341
    %v1343 = vrot.slane %v69, %v1342
    %v1344 = vmul.f32 %v1338, %v1343
    %v1345 = vmul.f32 %v1339, %v1343
    %v1346 = vlaneseq
    %v1347 = vshrl.u32 %v1346, 7
    %v1348 = vsub.s32 0, %v1347
    %v1349 = vrot.slane %v70, %v1348
    %v1350 = vadd.f32 %v1344, %v1349
    %v1351 = vadd.f32 %v1345, %v1349
    %v1352 = vpack.c.bf16 %v1351, %v1350
    %v1353 = vld [vmem:[#allocation2] sm:$0xf]
    %v1354 = vld [vmem:[#allocation2 + $0x4] sm:$0xf]
    %v1355 = vld [vmem:[#allocation2 + $0x8] sm:$0xf]
    %v1356 = vld [vmem:[#allocation2 + $0xc] sm:$0xf]
    %v1357 = vld [vmem:[#allocation5] sm:$0x1]
    %v1359 = vlaneseq
    %v1360 = vshrl.u32 %v1359, 7
    %v1361 = vsub.s32 0, %v1360
    %v1362 = vrot.slane %v1357, %v1361
    %v1368 = vunpack.c.l.b16 %v1353
    %v1369 = vunpack.c.l.b16 %v1354
    %v1370 = vunpack.c.l.b16 %v1355
    %v1371 = vunpack.c.l.b16 %v1356
    %v1372 = vpack.c.b16 %v1369, %v1368
    %v1373 = vpack.c.b16 %v1371, %v1370
    %v1377 = vsel %vm98, %v1352, 0
    %1379 = vmatprep.subr.bf16.mxu0 0
    %1380 = vmatpush1.bf16.msra.mxu0 0
    %1381 = vmatprep.subr.bf16.mxu0 0
    %1382 = vmatpush1.bf16.msra.mxu0 0
    %1383 = vmatprep.subr.bf16.mxu0 0
    %1384 = vmatpush1.bf16.msra.mxu0 0
    %1385 = vmatprep.subr.bf16.mxu0 0
    %1386 = vmatpush1.bf16.msra.mxu0 0
    %1387 = vmatprep.subr.bf16.mxu0 0
    %1388 = vmatpush1.bf16.msra.mxu0 0
    %1389 = vmatprep.subr.bf16.mxu0 0
    %1390 = vmatpush1.bf16.msra.mxu0 0
    %1391 = vmatprep.subr.bf16.mxu0 0
    %1392 = vmatpush1.bf16.msra.mxu0 %v1373
    %1393 = vmatprep.subr.bf16.mxu0 0
    %1394 = vmatpush1.bf16.msra.mxu0 %v1372
    %1395 = vmatprep.subr.bf16.mxu0 0
    %1396 = vmatpush2.bf16.msra.mxu0 0
    %1397 = vmatprep.subr.bf16.mxu0 0
    %1398 = vmatpush2.bf16.msra.mxu0 0
    %1399 = vmatprep.subr.bf16.mxu0 0
    %1400 = vmatpush2.bf16.msra.mxu0 0
    %1401 = vmatprep.subr.bf16.mxu0 0
    %1402 = vmatpush2.bf16.msra.mxu0 0
    %1403 = vmatprep.subr.bf16.mxu0 0
    %1404 = vmatpush2.bf16.msra.mxu0 0
    %1405 = vmatprep.subr.bf16.mxu0 0
    %1406 = vmatpush2.bf16.msra.mxu0 0
    %1407 = vmatprep.subr.bf16.mxu0 0
    %1408 = vmatpush2.bf16.msra.mxu0 0
    %1409 = vmatprep.subr.bf16.mxu0 0
    %1410 = vmatpush2.bf16.msra.mxu0 0
    %1411 = vmatprep.mubr.bf16.mxu0 0
    %1412 = vmatmul.mubr.bf16.gmra.mxu0 %v1377
    %v1413 = vpop.f32.mrf.mxu0
    %v1414 = vadd.f32 %v1362, %v1413
    %v1415 = vpop.f32.mrf.mxu0
    %v1416 = vpop.f32.mrf.mxu0
    %v1417 = vadd.f32 %v1362, %v1416
    %v1418 = vpop.f32.mrf.mxu0
    %1419 = vdwg.mxu0
    %v1420 = vmax.f32 %v1414, 0.0
    %v1421 = vmax.f32 %v1417, 0.0
    %v1422 = vpack.c.bf16 %v1421, %v1420
    %v1423 = vld [vmem:[%s7] sm:$0xf]
    %v1424 = vld [vmem:[%s7 + $0x4] sm:$0xf]
    %v1425 = vld [vmem:[%s7 + $0x8] sm:$0xf]
    %v1426 = vld [vmem:[%s7 + $0xc] sm:$0xf]
    %v1427 = vld [vmem:[%s7 + $0x10] sm:$0xf]
    %v1428 = vld [vmem:[%s7 + $0x14] sm:$0xf]
    %v1429 = vld [vmem:[%s7 + $0x18] sm:$0xf]
    %v1430 = vld [vmem:[%s7 + $0x1c] sm:$0xf]
    %v1431 = vlaneseq
    %v1432 = vshrl.u32 %v1431, 7
    %v1433 = vsub.s32 0, %v1432
    %v1434 = vrot.slane %v68, %v1433
    %v1443 = vunpack.c.l.b16 %v1423
    %v1444 = vunpack.c.l.b16 %v1424
    %v1445 = vunpack.c.l.b16 %v1425
    %v1446 = vunpack.c.l.b16 %v1426
    %v1447 = vunpack.c.l.b16 %v1427
    %v1448 = vunpack.c.l.b16 %v1428
    %v1449 = vunpack.c.l.b16 %v1429
    %v1450 = vunpack.c.l.b16 %v1430
    %v1451 = vpack.c.b16 %v1444, %v1443
    %v1452 = vpack.c.b16 %v1446, %v1445
    %v1453 = vpack.c.b16 %v1448, %v1447
    %v1454 = vpack.c.b16 %v1450, %v1449
    %vm1459 = vcmask 523264
    %v1461 = vsel %vm1459, %v1422, 0
    %1463 = vmatprep.subr.bf16.mxu0 0
    %1464 = vmatpush1.bf16.msra.mxu0 0
    %1465 = vmatprep.subr.bf16.mxu0 0
    %1466 = vmatpush1.bf16.msra.mxu0 0
    %1467 = vmatprep.subr.bf16.mxu0 0
    %1468 = vmatpush1.bf16.msra.mxu0 0
    %1469 = vmatprep.subr.bf16.mxu0 0
    %1470 = vmatpush1.bf16.msra.mxu0 0
    %1471 = vmatprep.subr.bf16.mxu0 0
    %1472 = vmatpush1.bf16.msra.mxu0 %v1454
    %1473 = vmatprep.subr.bf16.mxu0 0
    %1474 = vmatpush1.bf16.msra.mxu0 %v1453
    %1475 = vmatprep.subr.bf16.mxu0 0
    %1476 = vmatpush1.bf16.msra.mxu0 %v1452
    %1477 = vmatprep.subr.bf16.mxu0 0
    %1478 = vmatpush1.bf16.msra.mxu0 %v1451
    %1479 = vmatprep.subr.bf16.mxu0 0
    %1480 = vmatpush2.bf16.msra.mxu0 0
    %1481 = vmatprep.subr.bf16.mxu0 0
    %1482 = vmatpush2.bf16.msra.mxu0 0
    %1483 = vmatprep.subr.bf16.mxu0 0
    %1484 = vmatpush2.bf16.msra.mxu0 0
    %1485 = vmatprep.subr.bf16.mxu0 0
    %1486 = vmatpush2.bf16.msra.mxu0 0
    %1487 = vmatprep.subr.bf16.mxu0 0
    %1488 = vmatpush2.bf16.msra.mxu0 0
    %1489 = vmatprep.subr.bf16.mxu0 0
    %1490 = vmatpush2.bf16.msra.mxu0 0
    %1491 = vmatprep.subr.bf16.mxu0 0
    %1492 = vmatpush2.bf16.msra.mxu0 0
    %1493 = vmatprep.subr.bf16.mxu0 0
    %1494 = vmatpush2.bf16.msra.mxu0 0
    %1495 = vmatprep.mubr.bf16.mxu0 0
    %1496 = vmatmul.mubr.bf16.gmra.mxu0 %v1461
    %v1497 = vpop.f32.mrf.mxu0
    %v1498 = vadd.f32 %v1434, %v1497
    %v1499 = vpop.f32.mrf.mxu0
    %v1500 = vpop.f32.mrf.mxu0
    %v1501 = vadd.f32 %v1434, %v1500
    %v1502 = vpop.f32.mrf.mxu0
    %1503 = vdwg.mxu0
    %v1504 = vadd.f32 %v1498, %v1350
    %v1505 = vadd.f32 %v1501, %v1351
    %v1506 = vsel %vm98, %v1504, 0.0
    %1507 = vadd.xlane.f32.xlu0 %v1506
    %v1508 = vpop.xlane.xlu0 %1507
    %v1509 = vsel %vm98, %v1505, 0.0
    %1510 = vadd.xlane.f32.xlu0 %v1509
    %v1511 = vpop.xlane.xlu0 %1510
    %v1512 = vmul.f32 %v1508, %v1319
    %v1513 = vmul.f32 %v1511, %v1319
    %v1514 = vsub.f32 %v1504, %v1512
    %v1515 = vsub.f32 %v1505, %v1513
    %v1516 = vmul.f32 %v1514, %v1514
    %v1517 = vmul.f32 %v1515, %v1515
    %v1518 = vsel %vm98, %v1516, 0.0
    %1519 = vadd.xlane.f32.xlu0 %v1518
    %v1520 = vpop.xlane.xlu0 %1519
    %v1521 = vsel %vm98, %v1517, 0.0
    %1522 = vadd.xlane.f32.xlu0 %v1521
    %v1523 = vpop.xlane.xlu0 %1522
    %v1524 = vmul.f32 %v1520, %v1319
    %v1525 = vmul.f32 %v1523, %v1319
    %v1526 = vadd.f32 %v1524, 1e-05
    %v1527 = vadd.f32 %v1525, 1e-05
    %v1528 = vrsqrt.pop %v1526
    %v1529 = vrsqrt.pop %v1527
    %v1530 = vmul.f32 %v1514, %v1528
    %v1531 = vmul.f32 %v1515, %v1529
    %v1532 = vlaneseq
    %v1533 = vshrl.u32 %v1532, 7
    %v1534 = vsub.s32 0, %v1533
    %v1535 = vrot.slane %v71, %v1534
    %v1536 = vmul.f32 %v1530, %v1535
    %v1537 = vmul.f32 %v1531, %v1535
    %v1538 = vlaneseq
    %v1539 = vshrl.u32 %v1538, 7
    %v1540 = vsub.s32 0, %v1539
    %v1541 = vrot.slane %v72, %v1540
    %v1542 = vadd.f32 %v1536, %v1541
    %v1543 = vadd.f32 %v1537, %v1541
    %1544 = vst.msk [vmem:[#allocation7] sm:$0xff] %vm98, %v1542
    %1545 = vst.msk [vmem:[#allocation7 + $0x8] sm:$0xff] %vm98, %v1543
    // Predicated region
    $region54: #{_encoder_layer_impl.1} parent=1 // pred_check
      _
    $region55: #{_encoder_layer_impl.1} parent=1 // pred_check_branch
      %1547 = sbr.rel (0) target = $region57
    $region56: #{_encoder_layer_impl.1} parent=1 // pred_region
      %s1549 = ssub.s32 256, 256
      %1550 = vsyncadd [#allocation4], %s1549
      %s1551 = sshll.u32 [#allocation7], 4
      %s1552 = int_to_ptr.vmem [resolvable:$true] %s1551
      %1557 = dma.vmem_to_hbm [thread:$0]  %s1552, 256, %s11, [#allocation4], 128, 128, 8
    $region57: #{_encoder_layer_impl.1} parent=1 // pred_fallthru
      _
    // Predicated region
    $region58: #{_encoder_layer_impl.1} parent=1 // pred_check
      _
    $region59: #{_encoder_layer_impl.1} parent=1 // pred_check_branch
      %1559 = sbr.rel (0) target = $region61
    $region60: #{_encoder_layer_impl.1} parent=1 // pred_region
      %1560 = dma.done [#allocation4], 256
    $region61: #{_encoder_layer_impl.1} parent=1 // pred_fallthru
      _
    %1561 = vsyncpa [#allocation3], 1
    %1562 = vsyncpa [#allocation6], 1
    %1563 = vsyncpa [#allocation4], 1

</llo_original>
